<compile_context>
chip_gen: v6e
topology: v6e:2x2x1
jax: 0.10.0
libtpu: 0.0.40
codegen_flags: <defaults>
</compile_context>

<pallas_src>
import functools

import numpy as np
import jax
import jax.numpy as jnp
from jax.experimental import pallas as pl
from jax.experimental.pallas import tpu as pltpu


# ----------------------------------------------------------------------------
# Pallas kernels
# ----------------------------------------------------------------------------
def _fft_kernel_complex(xr_ref, xi_ref, wt_ref, wb_ref, re_ref, im_ref, *,
                        gw, precision):
    # acc = [xr | xi] @ [[Wr, Wi], [-Wi, Wr]]  ==  xr @ wtop + xi @ wbot
    wdt = wt_ref.dtype
    acc = jnp.dot(xr_ref[...].astype(wdt), wt_ref[...],
                  preferred_element_type=jnp.float32, precision=precision)
    acc = acc + jnp.dot(xi_ref[...].astype(wdt), wb_ref[...],
                        preferred_element_type=jnp.float32, precision=precision)
    re_ref[...] = acc[:, :gw].astype(re_ref.dtype)
    im_ref[...] = acc[:, gw:].astype(im_ref.dtype)


def _fft_kernel_real(xr_ref, wt_ref, re_ref, im_ref, *, gw, precision):
    # Real-input fast path: imag(x) == 0 -> a single matmul, no zeros streamed.
    acc = jnp.dot(xr_ref[...].astype(wt_ref.dtype), wt_ref[...],
                  preferred_element_type=jnp.float32, precision=precision)
    re_ref[...] = acc[:, :gw].astype(re_ref.dtype)
    im_ref[...] = acc[:, gw:].astype(im_ref.dtype)


# ----------------------------------------------------------------------------
# Weight construction (matches the PyTorch __init__ exactly, incl. np.power),
# with optional block-diagonal window packing (G windows per packed row).
# ----------------------------------------------------------------------------
def _make_dft_weights(window_size: int, inverse: bool, pack: int, dtype):
    W = window_size
    kn = np.arange(W)[:, None] * np.arange(W)
    if inverse:
        w = np.power(np.exp(2 * np.pi * 1j / W), kn) / W
    else:
        w = np.power(np.exp(-2 * np.pi * 1j / W), kn)
    # Conv1d: out[b, k] = sum_n w[k, n] * x[b, n]  ->  out = x @ w.T
    wr = np.asarray(w.real.T, dtype=np.float32)            # (W, W)
    wi = np.asarray(w.imag.T, dtype=np.float32)            # (W, W)

    G = pack
    GW = G * W
    wr_bd = np.zeros((GW, GW), np.float32)
    wi_bd = np.zeros((GW, GW), np.float32)
    for g in range(G):
        sl = slice(g * W, (g + 1) * W)
        wr_bd[sl, sl] = wr
        wi_bd[sl, sl] = wi

    # Columns: [ real of all G windows | imag of all G windows ]
    wtop = np.concatenate([wr_bd, wi_bd], axis=1)           # (GW, 2GW) for x_r
    wbot = np.concatenate([-wi_bd, wr_bd], axis=1)          # (GW, 2GW) for x_i
    return jnp.asarray(wtop, dtype=dtype), jnp.asarray(wbot, dtype=dtype)


# ----------------------------------------------------------------------------
# Heuristics
# ----------------------------------------------------------------------------
def _pick_pack(M: int, W: int, lane_target: int = 128) -> int:
    """Largest G <= lane_target//W that divides M (so no padding pass)."""
    if W >= lane_target or M <= 1:
        return 1
    target = min(lane_target // W, M)
    for g in range(target, 0, -1):
        if M % g == 0:
            return g
    return 1


def _vmem_capacity_bytes() -> int:
    try:
        cap = int(pltpu.get_tpu_info().vmem_capacity_bytes)
        if cap > 0:
            return cap
    except Exception:
        pass
    return 64 * 1024 * 1024      # conservative fallback (v7x per-core VMEM)


def _choose_tile_m(Mp: int, gw: int, n_act: int, in_itemsize: int,
                   out_itemsize: int, weight_bytes: int,
                   vmem_budget: int, sublane: int) -> int:
    # Double-buffered activations + double-buffered outputs; the grid-invariant
    # weights still occupy (up to) two buffers, so subtract them from budget.
    per_row = 2 * n_act * gw * in_itemsize + 2 * 2 * gw * out_itemsize
    usable = max(vmem_budget - 2 * weight_bytes, per_row * sublane)
    t = usable // max(per_row, 1)
    t = int(min(t, 4096, Mp))
    if t >= Mp:
        # Whole batch fits in one step; split only when each megacore share
        # would still be >= ~512 rows (per-step overhead ~0.35 us otherwise).
        if Mp >= 1024:
            t = max(256, ((Mp // 2) // 256) * 256)
        else:
            return max(1, int(Mp))
    if t >= 512:
        t = (t // 256) * 256
    t = max(sublane, (t // sublane) * sublane)
    return int(max(1, min(t, Mp)))


# ----------------------------------------------------------------------------
# Forward wrapper (Pallas equivalent of FFT.forward(x_r, x_i, inverse))
# ----------------------------------------------------------------------------
def fft_forward(x_r, x_i=None, *, window_size=None, inverse=False,
                tile_m=None, compute_dtype=None, precision=None,
                interpret=False):
    shape = x_r.shape
    W = shape[-1]
    if window_size is None:
        window_size = W
    assert window_size == W, "module reshape implies last dim == window_size"

    real_only = x_i is None
    M = int(np.prod(shape[:-1])) if len(shape) > 1 else 1

    # Compute dtype follows the producer (no wrapper-side HBM cast pass).
    if compute_dtype is None:
        compute_dtype = jnp.bfloat16 if x_r.dtype == jnp.bfloat16 else jnp.float32
    compute_dtype = jnp.dtype(compute_dtype)
    if x_r.dtype == jnp.bfloat16:
        out_dtype = jnp.bfloat16
    else:
        out_dtype = jnp.float32
    in_itemsize = jnp.dtype(x_r.dtype).itemsize
    out_itemsize = jnp.dtype(out_dtype).itemsize
    w_itemsize = compute_dtype.itemsize

    # DFT accumulates W terms; keep full f32 accuracy for f32 compute.
    if precision is None and compute_dtype == jnp.float32:
        precision = jax.lax.Precision.HIGHEST

    # Lane-dense window packing (contiguous reshape: no data movement).
    G = _pick_pack(M, W)
    GW = G * W
    Mp = M // G
    xr_p = x_r.reshape(Mp, GW)
    xi_p = None if real_only else x_i.reshape(Mp, GW)

    wtop, wbot = _make_dft_weights(W, inverse, G, compute_dtype)
    n_act = 1 if real_only else 2
    n_w = 1 if real_only else 2
    weight_bytes = n_w * GW * (2 * GW) * w_itemsize

    cap = _vmem_capacity_bytes()
    vmem_limit = int(cap * 0.75)
    budget = int(cap * 0.6)

    sublane = max(8, 32 // in_itemsize)          # 8 f32 / 16 bf16 / 32 int8
    if tile_m is None:
        tile_m = _choose_tile_m(Mp, GW, n_act, in_itemsize, out_itemsize,
                                weight_bytes, budget, sublane)
    tile_m = int(max(1, min(int(tile_m), Mp)))

    grid = (pl.cdiv(Mp, tile_m),)                # ragged final block, no pad

    x_spec = pl.BlockSpec((tile_m, GW), lambda i: (i, 0))
    w_spec = pl.BlockSpec((GW, 2 * GW), lambda i: (0, 0))   # grid-invariant
    y_spec = pl.BlockSpec((tile_m, GW), lambda i: (i, 0))   # lane-dense output

    if real_only:
        kernel = functools.partial(_fft_kernel_real, gw=GW, precision=precision)
        in_specs = [x_spec, w_spec]
        args = (xr_p, wtop)
    else:
        kernel = functools.partial(_fft_kernel_complex, gw=GW, precision=precision)
        in_specs = [x_spec, x_spec, w_spec, w_spec]
        args = (xr_p, xi_p, wtop, wbot)

    flops = 2 * Mp * GW * (2 * GW) * n_act
    bytes_accessed = (n_act * Mp * GW * in_itemsize     # activation reads
                      + weight_bytes                    # weights read ONCE
                      + 2 * Mp * GW * out_itemsize)     # real + imag writes
    cost = pl.CostEstimate(flops=int(flops), transcendentals=0,
                           bytes_accessed=int(bytes_accessed))

    y_re, y_im = pl.pallas_call(
        kernel,
        out_shape=(jax.ShapeDtypeStruct((Mp, GW), out_dtype),
                   jax.ShapeDtypeStruct((Mp, GW), out_dtype)),
        grid_spec=pltpu.PrefetchScalarGridSpec(
            num_scalar_prefetch=0,
            grid=grid,
            in_specs=in_specs,
            out_specs=[y_spec, y_spec],
        ),
        compiler_params=pltpu.CompilerParams(
            dimension_semantics=("parallel",),
            vmem_limit_bytes=vmem_limit,
        ),
        cost_estimate=cost,
        interpret=interpret,
    )(*args)

    # Contiguous reshapes back to the original shape (no slicing passes).
    return y_re.reshape(shape), y_im.reshape(shape)


# ----------------------------------------------------------------------------
# Pure-JAX reference for correctness checking
# ----------------------------------------------------------------------------
def fft_reference(x_r, x_i, inverse=False):
    if x_i is None:
        x_i = jnp.zeros_like(x_r)
    shape = x_r.shape
    W = shape[-1]
    M = int(np.prod(shape[:-1])) if len(shape) > 1 else 1
    kn = np.arange(W)[:, None] * np.arange(W)
    if inverse:
        w = np.power(np.exp(2 * np.pi * 1j / W), kn) / W
    else:
        w = np.power(np.exp(-2 * np.pi * 1j / W), kn)
    wr_t = jnp.asarray(w.real.T, dtype=jnp.float32)
    wi_t = jnp.asarray(w.imag.T, dtype=jnp.float32)
    xr2 = x_r.reshape(M, W).astype(jnp.float32)
    xi2 = x_i.reshape(M, W).astype(jnp.float32)
    real = xr2 @ wr_t - xi2 @ wi_t
    imag = xr2 @ wi_t + xi2 @ wr_t
    return real.reshape(shape), imag.reshape(shape)


if __name__ == "__main__":
    window_size = 16
    batch_shape = (2, 4)                    # flattened batch M = 8 -> packs to G = 8
    key = jax.random.PRNGKey(0)
    k1, k2 = jax.random.split(key)
    x_r = jax.random.normal(k1, batch_shape + (window_size,), dtype=jnp.float32)
    x_i = jax.random.normal(k2, batch_shape + (window_size,), dtype=jnp.float32)

    # 1) Forward DFT (complex input)
    real, imag = fft_forward(x_r, x_i, window_size=window_size, inverse=False)
    real = jax.block_until_ready(real)
    imag = jax.block_until_ready(imag)
    r_ref, i_ref = fft_reference(x_r, x_i, inverse=False)
    np.testing.assert_allclose(np.asarray(real), np.asarray(r_ref), rtol=1e-4, atol=1e-4)
    np.testing.assert_allclose(np.asarray(imag), np.asarray(i_ref), rtol=1e-4, atol=1e-4)

    # 2) Inverse DFT round-trip: iFFT(FFT(x)) == x
    rec_r, rec_i = fft_forward(real, imag, window_size=window_size, inverse=True)
    rec_r = jax.block_until_ready(rec_r)
    rec_i = jax.block_until_ready(rec_i)
    np.testing.assert_allclose(np.asarray(rec_r), np.asarray(x_r), rtol=1e-4, atol=1e-4)
    np.testing.assert_allclose(np.asarray(rec_i), np.asarray(x_i), rtol=1e-4, atol=1e-4)

    # 3) Real-input fast path (x_i is None): single-matmul kernel
    r0, i0 = fft_forward(x_r, None, window_size=window_size, inverse=False)
    r0 = jax.block_until_ready(r0)
    i0 = jax.block_until_ready(i0)
    r0_ref, i0_ref = fft_reference(x_r, None, inverse=False)
    np.testing.assert_allclose(np.asarray(r0), np.asarray(r0_ref), rtol=1e-4, atol=1e-4)
    np.testing.assert_allclose(np.asarray(i0), np.asarray(i0_ref), rtol=1e-4, atol=1e-4)

    # 4) Batch that does not pack to a full 128-lane group (M = 20 -> G = 5)
    x3_r = jax.random.normal(jax.random.PRNGKey(1), (5, 4, window_size), dtype=jnp.float32)
    x3_i = jax.random.normal(jax.random.PRNGKey(2), (5, 4, window_size), dtype=jnp.float32)
    r3, i3 = fft_forward(x3_r, x3_i, inverse=False)
    r3 = jax.block_until_ready(r3)
    i3 = jax.block_until_ready(i3)
    r3_ref, i3_ref = fft_reference(x3_r, x3_i, inverse=False)
    np.testing.assert_allclose(np.asarray(r3), np.asarray(r3_ref), rtol=1e-4, atol=1e-4)
    np.testing.assert_allclose(np.asarray(i3), np.asarray(i3_ref), rtol=1e-4, atol=1e-4)

    print("KERNEL_OK")
</pallas_src>

<mosaic_0001>
module attributes {stable_mosaic.version = 11 : i64} {
  func.func @_fft_kernel_complex(%arg0: i32, %arg1: memref<1x128xf32, #tpu.memory_space<vmem>>, %arg2: memref<1x128xf32, #tpu.memory_space<vmem>>, %arg3: memref<128x256xf32, #tpu.memory_space<vmem>>, %arg4: memref<128x256xf32, #tpu.memory_space<vmem>>, %arg5: memref<1x128xf32, #tpu.memory_space<vmem>>, %arg6: memref<1x128xf32, #tpu.memory_space<vmem>>) attributes {dimension_semantics = [#tpu.dimension_semantics<parallel>], iteration_bounds = array<i64: 1>, scalar_prefetch = 0 : i64, scratch_operands = 0 : i64, tpu.core_type = #tpu.core_type<tc>, window_params = [{transform_indices = @transform_0, window_bounds = array<i64: 1, 128>}, {transform_indices = @transform_1, window_bounds = array<i64: 1, 128>}, {pipeline_mode = #tpu.pipeline_mode<synchronous>, transform_indices = @transform_2, window_bounds = array<i64: 128, 256>}, {pipeline_mode = #tpu.pipeline_mode<synchronous>, transform_indices = @transform_3, window_bounds = array<i64: 128, 256>}, {transform_indices = @transform_4, window_bounds = array<i64: 1, 128>}, {transform_indices = @transform_5, window_bounds = array<i64: 1, 128>}]} {
    %c0 = arith.constant 0 : index
    %c0_0 = arith.constant 0 : index
    %0 = vector.load %arg1[%c0, %c0_0] : memref<1x128xf32, #tpu.memory_space<vmem>>, vector<1x128xf32>
    %c0_1 = arith.constant 0 : index
    %c0_2 = arith.constant 0 : index
    %1 = vector.load %arg3[%c0_1, %c0_2] : memref<128x256xf32, #tpu.memory_space<vmem>>, vector<128x256xf32>
    %cst = arith.constant dense<0.000000e+00> : vector<1x256xf32>
    %2 = tpu.matmul %0, %1, %cst {dimension_numbers = #tpu.dot_dimension_numbers<[1], [0], [0], [1], [0, 0, 1, 1], [], []>, precision = #tpu.contract_precision<fp32>} : vector<1x128xf32>, vector<128x256xf32>, vector<1x256xf32> -> vector<1x256xf32>
    %c0_3 = arith.constant 0 : index
    %c0_4 = arith.constant 0 : index
    %3 = vector.load %arg2[%c0_3, %c0_4] : memref<1x128xf32, #tpu.memory_space<vmem>>, vector<1x128xf32>
    %c0_5 = arith.constant 0 : index
    %c0_6 = arith.constant 0 : index
    %4 = vector.load %arg4[%c0_5, %c0_6] : memref<128x256xf32, #tpu.memory_space<vmem>>, vector<128x256xf32>
    %cst_7 = arith.constant dense<0.000000e+00> : vector<1x256xf32>
    %5 = tpu.matmul %3, %4, %cst_7 {dimension_numbers = #tpu.dot_dimension_numbers<[1], [0], [0], [1], [0, 0, 1, 1], [], []>, precision = #tpu.contract_precision<fp32>} : vector<1x128xf32>, vector<128x256xf32>, vector<1x256xf32> -> vector<1x256xf32>
    %6 = arith.addf %2, %5 : vector<1x256xf32>
    %7 = vector.extract_strided_slice %6 {offsets = [0, 0], sizes = [1, 128], strides = [1, 1]} : vector<1x256xf32> to vector<1x128xf32>
    %c0_8 = arith.constant 0 : index
    %c0_9 = arith.constant 0 : index
    %8 = vector.load %arg5[%c0_8, %c0_9] : memref<1x128xf32, #tpu.memory_space<vmem>>, vector<1x128xf32>
    tpu.vector_store %arg5[%c0_8, %c0_9], %7 {strides = array<i32>} : memref<1x128xf32, #tpu.memory_space<vmem>>, vector<1x128xf32>,
    %9 = vector.extract_strided_slice %6 {offsets = [0, 128], sizes = [1, 128], strides = [1, 1]} : vector<1x256xf32> to vector<1x128xf32>
    %c0_10 = arith.constant 0 : index
    %c0_11 = arith.constant 0 : index
    %10 = vector.load %arg6[%c0_10, %c0_11] : memref<1x128xf32, #tpu.memory_space<vmem>>, vector<1x128xf32>
    tpu.vector_store %arg6[%c0_10, %c0_11], %9 {strides = array<i32>} : memref<1x128xf32, #tpu.memory_space<vmem>>, vector<1x128xf32>,
    return
  }
  func.func @transform_0(%arg0: i32) -> (i32, i32) {
    %c0_i32 = arith.constant 0 : i32
    %c0_i32_0 = arith.constant 0 : i32
    return %arg0, %c0_i32 : i32, i32
  }
  func.func @transform_1(%arg0: i32) -> (i32, i32) {
    %c0_i32 = arith.constant 0 : i32
    %c0_i32_0 = arith.constant 0 : i32
    return %arg0, %c0_i32 : i32, i32
  }
  func.func @transform_2(%arg0: i32) -> (i32, i32) {
    %c0_i32 = arith.constant 0 : i32
    %c0_i32_0 = arith.constant 0 : i32
    %c0_i32_1 = arith.constant 0 : i32
    return %c0_i32, %c0_i32_0 : i32, i32
  }
  func.func @transform_3(%arg0: i32) -> (i32, i32) {
    %c0_i32 = arith.constant 0 : i32
    %c0_i32_0 = arith.constant 0 : i32
    %c0_i32_1 = arith.constant 0 : i32
    return %c0_i32, %c0_i32_0 : i32, i32
  }
  func.func @transform_4(%arg0: i32) -> (i32, i32) {
    %c0_i32 = arith.constant 0 : i32
    %c0_i32_0 = arith.constant 0 : i32
    return %arg0, %c0_i32 : i32, i32
  }
  func.func @transform_5(%arg0: i32) -> (i32, i32) {
    %c0_i32 = arith.constant 0 : i32
    %c0_i32_0 = arith.constant 0 : i32
    return %arg0, %c0_i32 : i32, i32
  }
}

</mosaic_0001>

<llo_original>
// kernel: tpu_custom_call.1
$region0: #{tpu_custom_call.1}
  #allocation0 [shape = 'u32[]', space=smem, size = 0x4, offset = 0x4, fixed_abs, tag = 'smem constant byte address 0x4 - core index']
  #allocation1 [shape = 'u32[144,128]{1,0:T(1,128)}', space=vmem, size = 0x12000, scoped, tag = 'internal scratch']
  %s0 = inlined_call_operand.hbm [shape: f32[1,128], index: 0, kind: input, shape index: {}]
  %s1 = inlined_call_operand.vmem [shape: f32[1,128], index: 1, kind: input, shape index: {}]
  %s2 = inlined_call_operand.hbm [shape: f32[128,256], index: 2, kind: input, shape index: {}]
  %s3 = inlined_call_operand.hbm [shape: f32[128,256], index: 3, kind: input, shape index: {}]
  %s4 = inlined_call_operand.hbm [shape: f32[1,128], index: 4, kind: output, shape index: {0}]
  %s5 = inlined_call_operand.hbm [shape: f32[1,128], index: 5, kind: output, shape index: {1}]
  %6 = xla_tuple %s4, %s5
  %s7 = sld [smem:[#allocation0]]
  $region46: #{tpu_custom_call.1} parent=0
    _
  %s9 = ssub.s32 1, %s7
  %s10 = scalar_select 0, %s9, %s7
  $region1: #{tpu_custom_call.1} parent=0
    #allocation2 [shape = 'u8[512]{0}', space=vmem, size = 0x400, scoped, tag = 'input window, operand 0, single buffered']
    #allocation3 [shape = 's32[1]{0}', space=sflag, size = 0x4, scoped, tag = 'scoped memory for tpu_custom_call.1']
    #allocation4 [shape = 's32[1]{0}', space=sflag, size = 0x4, scoped, tag = 'scoped memory for tpu_custom_call.1']
    #allocation5 [shape = 'u8[131072]{0}', space=vmem, size = 0x20000, scoped, tag = 'input window, operand 2, single buffered']
    #allocation6 [shape = 's32[1]{0}', space=sflag, size = 0x4, scoped, tag = 'scoped memory for tpu_custom_call.1']
    #allocation7 [shape = 'u8[131072]{0}', space=vmem, size = 0x20000, scoped, tag = 'input window, operand 3, single buffered']
    #allocation8 [shape = 'u8[512]{0}', space=vmem, size = 0x400, scoped, tag = 'output window, operand 0, single buffered']
    #allocation9 [shape = 'u8[512]{0}', space=vmem, size = 0x400, scoped, tag = 'output window, operand 1, single buffered']
    #allocation10 [shape = 's32[1]{0}', space=sflag, size = 0x4, scoped, tag = 'scoped memory for tpu_custom_call.1']
    %11 = vsyncpa [#allocation3], 0
    %12 = vsyncpa [#allocation6], 0
    %13 = vsyncpa [#allocation4], 0
    %14 = vsyncpa [#allocation10], 0
    // Predicated region
    $region2: #{tpu_custom_call.1} parent=1 // pred_check
      _
    $region3: #{tpu_custom_call.1} parent=1 // pred_check_branch
      %16 = sbr.rel (0) target = $region5
    $region4: #{tpu_custom_call.1} parent=1 // pred_region
      %s18 = ssub.s32 16, 16
      %19 = vsyncadd [#allocation3], %s18
      %s21 = sshll.u32 [#allocation2], 4
      %s22 = int_to_ptr.vmem [resolvable:$true] %s21
      %24 = dma.hbm_to_vmem [thread:$0]  %s0, 16, %s22, [#allocation3]
    $region5: #{tpu_custom_call.1} parent=1 // pred_fallthru
      _
    // Predicated region
    $region6: #{tpu_custom_call.1} parent=1 // pred_check
      _
    $region7: #{tpu_custom_call.1} parent=1 // pred_check_branch
      %26 = sbr.rel (0) target = $region9
    $region8: #{tpu_custom_call.1} parent=1 // pred_region
      _
    $region9: #{tpu_custom_call.1} parent=1 // pred_fallthru
      _
    // Predicated region
    $region10: #{tpu_custom_call.1} parent=1 // pred_check
      _
    $region11: #{tpu_custom_call.1} parent=1 // pred_check_branch
      %28 = sbr.rel (0) target = $region13
    $region12: #{tpu_custom_call.1} parent=1 // pred_region
      %s30 = ssub.s32 4096, 4096
      %31 = vsyncadd [#allocation6], %s30
      %s32 = sshll.u32 [#allocation5], 4
      %s33 = int_to_ptr.vmem [resolvable:$true] %s32
      %38 = dma.hbm_to_vmem [thread:$0]  %s2, 4096, %s33, [#allocation6], 256, 256, 16
    $region13: #{tpu_custom_call.1} parent=1 // pred_fallthru
      _
    // Predicated region
    $region14: #{tpu_custom_call.1} parent=1 // pred_check
      _
    $region15: #{tpu_custom_call.1} parent=1 // pred_check_branch
      %40 = sbr.rel (0) target = $region17
    $region16: #{tpu_custom_call.1} parent=1 // pred_region
      %s42 = ssub.s32 4096, 4096
      %43 = vsyncadd [#allocation6], %s42
      %s44 = sshll.u32 [#allocation7], 4
      %s45 = int_to_ptr.vmem [resolvable:$true] %s44
      %50 = dma.hbm_to_vmem [thread:$0]  %s3, 4096, %s45, [#allocation6], 256, 256, 16
    $region17: #{tpu_custom_call.1} parent=1 // pred_fallthru
      _
    // Predicated region
    $region18: #{tpu_custom_call.1} parent=1 // pred_check
      _
    $region19: #{tpu_custom_call.1} parent=1 // pred_check_branch
      %52 = sbr.rel (0) target = $region21
    $region20: #{tpu_custom_call.1} parent=1 // pred_region
      %53 = dma.done [#allocation3], 16
    $region21: #{tpu_custom_call.1} parent=1 // pred_fallthru
      _
    // Predicated region
    $region22: #{tpu_custom_call.1} parent=1 // pred_check
      _
    $region23: #{tpu_custom_call.1} parent=1 // pred_check_branch
      %55 = sbr.rel (0) target = $region25
    $region24: #{tpu_custom_call.1} parent=1 // pred_region
      %56 = dma.done [#allocation6], 4096
    $region25: #{tpu_custom_call.1} parent=1 // pred_fallthru
      _
    // Predicated region
    $region26: #{tpu_custom_call.1} parent=1 // pred_check
      _
    $region27: #{tpu_custom_call.1} parent=1 // pred_check_branch
      %58 = sbr.rel (0) target = $region29
    $region28: #{tpu_custom_call.1} parent=1 // pred_region
      %59 = dma.done [#allocation6], 4096
    $region29: #{tpu_custom_call.1} parent=1 // pred_fallthru
      _
    %v60 = vld [vmem:[#allocation2] sm:$0x1]
    %v61 = vld [vmem:[#allocation5] sm:$0xff]
    %v62 = vld [vmem:[#allocation5 + $0x8] sm:$0xff]
    %v63 = vld [vmem:[#allocation5 + $0x10] sm:$0xff]
    %v64 = vld [vmem:[#allocation5 + $0x18] sm:$0xff]
    %v65 = vld [vmem:[#allocation5 + $0x20] sm:$0xff]
    %v66 = vld [vmem:[#allocation5 + $0x28] sm:$0xff]
    %v67 = vld [vmem:[#allocation5 + $0x30] sm:$0xff]
    %v68 = vld [vmem:[#allocation5 + $0x38] sm:$0xff]
    %v69 = vld [vmem:[#allocation5 + $0x40] sm:$0xff]
    %v70 = vld [vmem:[#allocation5 + $0x48] sm:$0xff]
    %v71 = vld [vmem:[#allocation5 + $0x50] sm:$0xff]
    %v72 = vld [vmem:[#allocation5 + $0x58] sm:$0xff]
    %v73 = vld [vmem:[#allocation5 + $0x60] sm:$0xff]
    %v74 = vld [vmem:[#allocation5 + $0x68] sm:$0xff]
    %v75 = vld [vmem:[#allocation5 + $0x70] sm:$0xff]
    %v76 = vld [vmem:[#allocation5 + $0x78] sm:$0xff]
    %v77 = vld [vmem:[#allocation5 + $0x80] sm:$0xff]
    %v78 = vld [vmem:[#allocation5 + $0x88] sm:$0xff]
    %v79 = vld [vmem:[#allocation5 + $0x90] sm:$0xff]
    %v80 = vld [vmem:[#allocation5 + $0x98] sm:$0xff]
    %v81 = vld [vmem:[#allocation5 + $0xa0] sm:$0xff]
    %v82 = vld [vmem:[#allocation5 + $0xa8] sm:$0xff]
    %v83 = vld [vmem:[#allocation5 + $0xb0] sm:$0xff]
    %v84 = vld [vmem:[#allocation5 + $0xb8] sm:$0xff]
    %v85 = vld [vmem:[#allocation5 + $0xc0] sm:$0xff]
    %v86 = vld [vmem:[#allocation5 + $0xc8] sm:$0xff]
    %v87 = vld [vmem:[#allocation5 + $0xd0] sm:$0xff]
    %v88 = vld [vmem:[#allocation5 + $0xd8] sm:$0xff]
    %v89 = vld [vmem:[#allocation5 + $0xe0] sm:$0xff]
    %v90 = vld [vmem:[#allocation5 + $0xe8] sm:$0xff]
    %v91 = vld [vmem:[#allocation5 + $0xf0] sm:$0xff]
    %v92 = vld [vmem:[#allocation5 + $0xf8] sm:$0xff]
    %v93 = vld [vmem:[%s1] sm:$0x1]
    %v94 = vld [vmem:[#allocation7] sm:$0xff]
    %v95 = vld [vmem:[#allocation7 + $0x8] sm:$0xff]
    %v96 = vld [vmem:[#allocation7 + $0x10] sm:$0xff]
    %v97 = vld [vmem:[#allocation7 + $0x18] sm:$0xff]
    %v98 = vld [vmem:[#allocation7 + $0x20] sm:$0xff]
    %v99 = vld [vmem:[#allocation7 + $0x28] sm:$0xff]
    %v100 = vld [vmem:[#allocation7 + $0x30] sm:$0xff]
    %v101 = vld [vmem:[#allocation7 + $0x38] sm:$0xff]
    %v102 = vld [vmem:[#allocation7 + $0x40] sm:$0xff]
    %v103 = vld [vmem:[#allocation7 + $0x48] sm:$0xff]
    %v104 = vld [vmem:[#allocation7 + $0x50] sm:$0xff]
    %v105 = vld [vmem:[#allocation7 + $0x58] sm:$0xff]
    %v106 = vld [vmem:[#allocation7 + $0x60] sm:$0xff]
    %v107 = vld [vmem:[#allocation7 + $0x68] sm:$0xff]
    %v108 = vld [vmem:[#allocation7 + $0x70] sm:$0xff]
    %v109 = vld [vmem:[#allocation7 + $0x78] sm:$0xff]
    %v110 = vld [vmem:[#allocation7 + $0x80] sm:$0xff]
    %v111 = vld [vmem:[#allocation7 + $0x88] sm:$0xff]
    %v112 = vld [vmem:[#allocation7 + $0x90] sm:$0xff]
    %v113 = vld [vmem:[#allocation7 + $0x98] sm:$0xff]
    %v114 = vld [vmem:[#allocation7 + $0xa0] sm:$0xff]
    %v115 = vld [vmem:[#allocation7 + $0xa8] sm:$0xff]
    %v116 = vld [vmem:[#allocation7 + $0xb0] sm:$0xff]
    %v117 = vld [vmem:[#allocation7 + $0xb8] sm:$0xff]
    %v118 = vld [vmem:[#allocation7 + $0xc0] sm:$0xff]
    %v119 = vld [vmem:[#allocation7 + $0xc8] sm:$0xff]
    %v120 = vld [vmem:[#allocation7 + $0xd0] sm:$0xff]
    %v121 = vld [vmem:[#allocation7 + $0xd8] sm:$0xff]
    %v122 = vld [vmem:[#allocation7 + $0xe0] sm:$0xff]
    %v123 = vld [vmem:[#allocation7 + $0xe8] sm:$0xff]
    %v124 = vld [vmem:[#allocation7 + $0xf0] sm:$0xff]
    %v125 = vld [vmem:[#allocation7 + $0xf8] sm:$0xff]
    %v126 = vand.u32 %v125, 4294901760
    %127 = vmatprep.subr.mxu0 %v126
    %v128 = vand.u32 %v124, 4294901760
    %129 = vmatpush1.msra.mxu0 %v128
    %v130 = vand.u32 %v123, 4294901760
    %131 = vmatprep.subr.mxu0 %v130
    %v132 = vand.u32 %v122, 4294901760
    %133 = vmatpush1.msra.mxu0 %v132
    %v134 = vand.u32 %v121, 4294901760
    %135 = vmatprep.subr.mxu0 %v134
    %v136 = vand.u32 %v120, 4294901760
    %137 = vmatpush1.msra.mxu0 %v136
    %v138 = vand.u32 %v119, 4294901760
    %139 = vmatprep.subr.mxu0 %v138
    %v140 = vand.u32 %v118, 4294901760
    %141 = vmatpush1.msra.mxu0 %v140
    %v142 = vand.u32 %v117, 4294901760
    %143 = vmatprep.subr.mxu0 %v142
    %v144 = vand.u32 %v116, 4294901760
    %145 = vmatpush1.msra.mxu0 %v144
    %v146 = vand.u32 %v115, 4294901760
    %147 = vmatprep.subr.mxu0 %v146
    %v148 = vand.u32 %v114, 4294901760
    %149 = vmatpush1.msra.mxu0 %v148
    %v150 = vand.u32 %v113, 4294901760
    %151 = vmatprep.subr.mxu0 %v150
    %v152 = vand.u32 %v112, 4294901760
    %153 = vmatpush1.msra.mxu0 %v152
    %v154 = vand.u32 %v111, 4294901760
    %155 = vmatprep.subr.mxu0 %v154
    %v156 = vand.u32 %v110, 4294901760
    %157 = vmatpush1.msra.mxu0 %v156
    %v158 = vand.u32 %v109, 4294901760
    %159 = vmatprep.subr.mxu0 %v158
    %v160 = vand.u32 %v108, 4294901760
    %161 = vmatpush1.msra.mxu0 %v160
    %v162 = vand.u32 %v107, 4294901760
    %163 = vmatprep.subr.mxu0 %v162
    %v164 = vand.u32 %v106, 4294901760
    %165 = vmatpush1.msra.mxu0 %v164
    %v166 = vand.u32 %v105, 4294901760
    %167 = vmatprep.subr.mxu0 %v166
    %v168 = vand.u32 %v104, 4294901760
    %169 = vmatpush1.msra.mxu0 %v168
    %v170 = vand.u32 %v103, 4294901760
    %171 = vmatprep.subr.mxu0 %v170
    %v172 = vand.u32 %v102, 4294901760
    %173 = vmatpush1.msra.mxu0 %v172
    %v174 = vand.u32 %v101, 4294901760
    %175 = vmatprep.subr.mxu0 %v174
    %v176 = vand.u32 %v100, 4294901760
    %177 = vmatpush1.msra.mxu0 %v176
    %v178 = vand.u32 %v99, 4294901760
    %179 = vmatprep.subr.mxu0 %v178
    %v180 = vand.u32 %v98, 4294901760
    %181 = vmatpush1.msra.mxu0 %v180
    %v182 = vand.u32 %v97, 4294901760
    %183 = vmatprep.subr.mxu0 %v182
    %v184 = vand.u32 %v96, 4294901760
    %185 = vmatpush1.msra.mxu0 %v184
    %v186 = vand.u32 %v95, 4294901760
    %187 = vmatprep.subr.mxu0 %v186
    %v188 = vand.u32 %v94, 4294901760
    %189 = vmatpush1.msra.mxu0 %v188
    %190 = vmatprep.subr.mxu0 0.0
    %191 = vmatpush2.msra.mxu0 0.0
    %192 = vmatprep.subr.mxu0 0.0
    %193 = vmatpush2.msra.mxu0 0.0
    %194 = vmatprep.subr.mxu0 0.0
    %195 = vmatpush2.msra.mxu0 0.0
    %196 = vmatprep.subr.mxu0 0.0
    %197 = vmatpush2.msra.mxu0 0.0
    %198 = vmatprep.subr.mxu0 0.0
    %199 = vmatpush2.msra.mxu0 0.0
    %200 = vmatprep.subr.mxu0 0.0
    %201 = vmatpush2.msra.mxu0 0.0
    %202 = vmatprep.subr.mxu0 0.0
    %203 = vmatpush2.msra.mxu0 0.0
    %204 = vmatprep.subr.mxu0 0.0
    %205 = vmatpush2.msra.mxu0 0.0
    %206 = vmatprep.subr.mxu0 0.0
    %207 = vmatpush2.msra.mxu0 0.0
    %208 = vmatprep.subr.mxu0 0.0
    %209 = vmatpush2.msra.mxu0 0.0
    %210 = vmatprep.subr.mxu0 0.0
    %211 = vmatpush2.msra.mxu0 0.0
    %212 = vmatprep.subr.mxu0 0.0
    %213 = vmatpush2.msra.mxu0 0.0
    %214 = vmatprep.subr.mxu0 0.0
    %215 = vmatpush2.msra.mxu0 0.0
    %216 = vmatprep.subr.mxu0 0.0
    %217 = vmatpush2.msra.mxu0 0.0
    %218 = vmatprep.subr.mxu0 0.0
    %219 = vmatpush2.msra.mxu0 0.0
    %220 = vmatprep.subr.mxu0 0.0
    %221 = vmatpush2.msra.mxu0 0.0
    %222 = vmatprep.mubr.f32.mxu0 0.0
    %v223 = vand.u32 %v93, 4294901760
    %v224 = vsub.f32 %v93, %v223
    %v225 = vand.u32 %v224, 4294901760
    %v226 = vsub.f32 %v224, %v225
    %v227 = vand.u32 %v226, 4294901760
    %228 = vmatmul.mubr.f32.gmra.mxu0 %v227
    %v229 = vpop.f32.mrf.mxu0
    %v230 = vadd.f32 0.0, %v229
    %v231 = vpop.f32.mrf.mxu0
    %v232 = vadd.f32 0.0, %v231
    %233 = vdwg.mxu0
    %v234 = vand.u32 %v125, 4294901760
    %v235 = vsub.f32 %v125, %v234
    %v236 = vand.u32 %v235, 4294901760
    %v237 = vsub.f32 %v235, %v236
    %v238 = vand.u32 %v237, 4294901760
    %239 = vmatprep.subr.mxu0 %v238
    %v240 = vand.u32 %v124, 4294901760
    %v241 = vsub.f32 %v124, %v240
    %v242 = vand.u32 %v241, 4294901760
    %v243 = vsub.f32 %v241, %v242
    %v244 = vand.u32 %v243, 4294901760
    %245 = vmatpush1.msra.mxu0 %v244
    %v246 = vand.u32 %v123, 4294901760
    %v247 = vsub.f32 %v123, %v246
    %v248 = vand.u32 %v247, 4294901760
    %v249 = vsub.f32 %v247, %v248
    %v250 = vand.u32 %v249, 4294901760
    %251 = vmatprep.subr.mxu0 %v250
    %v252 = vand.u32 %v122, 4294901760
    %v253 = vsub.f32 %v122, %v252
    %v254 = vand.u32 %v253, 4294901760
    %v255 = vsub.f32 %v253, %v254
    %v256 = vand.u32 %v255, 4294901760
    %257 = vmatpush1.msra.mxu0 %v256
    %v258 = vand.u32 %v121, 4294901760
    %v259 = vsub.f32 %v121, %v258
    %v260 = vand.u32 %v259, 4294901760
    %v261 = vsub.f32 %v259, %v260
    %v262 = vand.u32 %v261, 4294901760
    %263 = vmatprep.subr.mxu0 %v262
    %v264 = vand.u32 %v120, 4294901760
    %v265 = vsub.f32 %v120, %v264
    %v266 = vand.u32 %v265, 4294901760
    %v267 = vsub.f32 %v265, %v266
    %v268 = vand.u32 %v267, 4294901760
    %269 = vmatpush1.msra.mxu0 %v268
    %v270 = vand.u32 %v119, 4294901760
    %v271 = vsub.f32 %v119, %v270
    %v272 = vand.u32 %v271, 4294901760
    %v273 = vsub.f32 %v271, %v272
    %v274 = vand.u32 %v273, 4294901760
    %275 = vmatprep.subr.mxu0 %v274
    %v276 = vand.u32 %v118, 4294901760
    %v277 = vsub.f32 %v118, %v276
    %v278 = vand.u32 %v277, 4294901760
    %v279 = vsub.f32 %v277, %v278
    %v280 = vand.u32 %v279, 4294901760
    %281 = vmatpush1.msra.mxu0 %v280
    %v282 = vand.u32 %v117, 4294901760
    %v283 = vsub.f32 %v117, %v282
    %v284 = vand.u32 %v283, 4294901760
    %v285 = vsub.f32 %v283, %v284
    %v286 = vand.u32 %v285, 4294901760
    %287 = vmatprep.subr.mxu0 %v286
    %v288 = vand.u32 %v116, 4294901760
    %v289 = vsub.f32 %v116, %v288
    %v290 = vand.u32 %v289, 4294901760
    %v291 = vsub.f32 %v289, %v290
    %v292 = vand.u32 %v291, 4294901760
    %293 = vmatpush1.msra.mxu0 %v292
    %v294 = vand.u32 %v115, 4294901760
    %v295 = vsub.f32 %v115, %v294
    %v296 = vand.u32 %v295, 4294901760
    %v297 = vsub.f32 %v295, %v296
    %v298 = vand.u32 %v297, 4294901760
    %299 = vmatprep.subr.mxu0 %v298
    %v300 = vand.u32 %v114, 4294901760
    %v301 = vsub.f32 %v114, %v300
    %v302 = vand.u32 %v301, 4294901760
    %v303 = vsub.f32 %v301, %v302
    %v304 = vand.u32 %v303, 4294901760
    %305 = vmatpush1.msra.mxu0 %v304
    %v306 = vand.u32 %v113, 4294901760
    %v307 = vsub.f32 %v113, %v306
    %v308 = vand.u32 %v307, 4294901760
    %v309 = vsub.f32 %v307, %v308
    %v310 = vand.u32 %v309, 4294901760
    %311 = vmatprep.subr.mxu0 %v310
    %v312 = vand.u32 %v112, 4294901760
    %v313 = vsub.f32 %v112, %v312
    %v314 = vand.u32 %v313, 4294901760
    %v315 = vsub.f32 %v313, %v314
    %v316 = vand.u32 %v315, 4294901760
    %317 = vmatpush1.msra.mxu0 %v316
    %v318 = vand.u32 %v111, 4294901760
    %v319 = vsub.f32 %v111, %v318
    %v320 = vand.u32 %v319, 4294901760
    %v321 = vsub.f32 %v319, %v320
    %v322 = vand.u32 %v321, 4294901760
    %323 = vmatprep.subr.mxu0 %v322
    %v324 = vand.u32 %v110, 4294901760
    %v325 = vsub.f32 %v110, %v324
    %v326 = vand.u32 %v325, 4294901760
    %v327 = vsub.f32 %v325, %v326
    %v328 = vand.u32 %v327, 4294901760
    %329 = vmatpush1.msra.mxu0 %v328
    %v330 = vand.u32 %v109, 4294901760
    %v331 = vsub.f32 %v109, %v330
    %v332 = vand.u32 %v331, 4294901760
    %v333 = vsub.f32 %v331, %v332
    %v334 = vand.u32 %v333, 4294901760
    %335 = vmatprep.subr.mxu0 %v334
    %v336 = vand.u32 %v108, 4294901760
    %v337 = vsub.f32 %v108, %v336
    %v338 = vand.u32 %v337, 4294901760
    %v339 = vsub.f32 %v337, %v338
    %v340 = vand.u32 %v339, 4294901760
    %341 = vmatpush1.msra.mxu0 %v340
    %v342 = vand.u32 %v107, 4294901760
    %v343 = vsub.f32 %v107, %v342
    %v344 = vand.u32 %v343, 4294901760
    %v345 = vsub.f32 %v343, %v344
    %v346 = vand.u32 %v345, 4294901760
    %347 = vmatprep.subr.mxu0 %v346
    %v348 = vand.u32 %v106, 4294901760
    %v349 = vsub.f32 %v106, %v348
    %v350 = vand.u32 %v349, 4294901760
    %v351 = vsub.f32 %v349, %v350
    %v352 = vand.u32 %v351, 4294901760
    %353 = vmatpush1.msra.mxu0 %v352
    %v354 = vand.u32 %v105, 4294901760
    %v355 = vsub.f32 %v105, %v354
    %v356 = vand.u32 %v355, 4294901760
    %v357 = vsub.f32 %v355, %v356
    %v358 = vand.u32 %v357, 4294901760
    %359 = vmatprep.subr.mxu0 %v358
    %v360 = vand.u32 %v104, 4294901760
    %v361 = vsub.f32 %v104, %v360
    %v362 = vand.u32 %v361, 4294901760
    %v363 = vsub.f32 %v361, %v362
    %v364 = vand.u32 %v363, 4294901760
    %365 = vmatpush1.msra.mxu0 %v364
    %v366 = vand.u32 %v103, 4294901760
    %v367 = vsub.f32 %v103, %v366
    %v368 = vand.u32 %v367, 4294901760
    %v369 = vsub.f32 %v367, %v368
    %v370 = vand.u32 %v369, 4294901760
    %371 = vmatprep.subr.mxu0 %v370
    %v372 = vand.u32 %v102, 4294901760
    %v373 = vsub.f32 %v102, %v372
    %v374 = vand.u32 %v373, 4294901760
    %v375 = vsub.f32 %v373, %v374
    %v376 = vand.u32 %v375, 4294901760
    %377 = vmatpush1.msra.mxu0 %v376
    %v378 = vand.u32 %v101, 4294901760
    %v379 = vsub.f32 %v101, %v378
    %v380 = vand.u32 %v379, 4294901760
    %v381 = vsub.f32 %v379, %v380
    %v382 = vand.u32 %v381, 4294901760
    %383 = vmatprep.subr.mxu0 %v382
    %v384 = vand.u32 %v100, 4294901760
    %v385 = vsub.f32 %v100, %v384
    %v386 = vand.u32 %v385, 4294901760
    %v387 = vsub.f32 %v385, %v386
    %v388 = vand.u32 %v387, 4294901760
    %389 = vmatpush1.msra.mxu0 %v388
    %v390 = vand.u32 %v99, 4294901760
    %v391 = vsub.f32 %v99, %v390
    %v392 = vand.u32 %v391, 4294901760
    %v393 = vsub.f32 %v391, %v392
    %v394 = vand.u32 %v393, 4294901760
    %395 = vmatprep.subr.mxu0 %v394
    %v396 = vand.u32 %v98, 4294901760
    %v397 = vsub.f32 %v98, %v396
    %v398 = vand.u32 %v397, 4294901760
    %v399 = vsub.f32 %v397, %v398
    %v400 = vand.u32 %v399, 4294901760
    %401 = vmatpush1.msra.mxu0 %v400
    %v402 = vand.u32 %v97, 4294901760
    %v403 = vsub.f32 %v97, %v402
    %v404 = vand.u32 %v403, 4294901760
    %v405 = vsub.f32 %v403, %v404
    %v406 = vand.u32 %v405, 4294901760
    %407 = vmatprep.subr.mxu0 %v406
    %v408 = vand.u32 %v96, 4294901760
    %v409 = vsub.f32 %v96, %v408
    %v410 = vand.u32 %v409, 4294901760
    %v411 = vsub.f32 %v409, %v410
    %v412 = vand.u32 %v411, 4294901760
    %413 = vmatpush1.msra.mxu0 %v412
    %v414 = vand.u32 %v95, 4294901760
    %v415 = vsub.f32 %v95, %v414
    %v416 = vand.u32 %v415, 4294901760
    %v417 = vsub.f32 %v415, %v416
    %v418 = vand.u32 %v417, 4294901760
    %419 = vmatprep.subr.mxu0 %v418
    %v420 = vand.u32 %v94, 4294901760
    %v421 = vsub.f32 %v94, %v420
    %v422 = vand.u32 %v421, 4294901760
    %v423 = vsub.f32 %v421, %v422
    %v424 = vand.u32 %v423, 4294901760
    %425 = vmatpush1.msra.mxu0 %v424
    %426 = vmatprep.subr.mxu0 0.0
    %427 = vmatpush2.msra.mxu0 0.0
    %428 = vmatprep.subr.mxu0 0.0
    %429 = vmatpush2.msra.mxu0 0.0
    %430 = vmatprep.subr.mxu0 0.0
    %431 = vmatpush2.msra.mxu0 0.0
    %432 = vmatprep.subr.mxu0 0.0
    %433 = vmatpush2.msra.mxu0 0.0
    %434 = vmatprep.subr.mxu0 0.0
    %435 = vmatpush2.msra.mxu0 0.0
    %436 = vmatprep.subr.mxu0 0.0
    %437 = vmatpush2.msra.mxu0 0.0
    %438 = vmatprep.subr.mxu0 0.0
    %439 = vmatpush2.msra.mxu0 0.0
    %440 = vmatprep.subr.mxu0 0.0
    %441 = vmatpush2.msra.mxu0 0.0
    %442 = vmatprep.subr.mxu0 0.0
    %443 = vmatpush2.msra.mxu0 0.0
    %444 = vmatprep.subr.mxu0 0.0
    %445 = vmatpush2.msra.mxu0 0.0
    %446 = vmatprep.subr.mxu0 0.0
    %447 = vmatpush2.msra.mxu0 0.0
    %448 = vmatprep.subr.mxu0 0.0
    %449 = vmatpush2.msra.mxu0 0.0
    %450 = vmatprep.subr.mxu0 0.0
    %451 = vmatpush2.msra.mxu0 0.0
    %452 = vmatprep.subr.mxu0 0.0
    %453 = vmatpush2.msra.mxu0 0.0
    %454 = vmatprep.subr.mxu0 0.0
    %455 = vmatpush2.msra.mxu0 0.0
    %456 = vmatprep.subr.mxu0 0.0
    %457 = vmatpush2.msra.mxu0 0.0
    %458 = vmatprep.mubr.f32.mxu0 0.0
    %v459 = vand.u32 %v93, 4294901760
    %460 = vmatmul.mubr.f32.gmra.mxu0 %v459
    %v461 = vpop.f32.mrf.mxu0
    %v462 = vadd.f32 %v230, %v461
    %v463 = vpop.f32.mrf.mxu0
    %v464 = vadd.f32 %v232, %v463
    %465 = vdwg.mxu0
    %v466 = vand.u32 %v125, 4294901760
    %v467 = vsub.f32 %v125, %v466
    %468 = vmatprep.subr.mxu0 %v467
    %v469 = vand.u32 %v124, 4294901760
    %v470 = vsub.f32 %v124, %v469
    %471 = vmatpush1.msra.mxu0 %v470
    %v472 = vand.u32 %v123, 4294901760
    %v473 = vsub.f32 %v123, %v472
    %474 = vmatprep.subr.mxu0 %v473
    %v475 = vand.u32 %v122, 4294901760
    %v476 = vsub.f32 %v122, %v475
    %477 = vmatpush1.msra.mxu0 %v476
    %v478 = vand.u32 %v121, 4294901760
    %v479 = vsub.f32 %v121, %v478
    %480 = vmatprep.subr.mxu0 %v479
    %v481 = vand.u32 %v120, 4294901760
    %v482 = vsub.f32 %v120, %v481
    %483 = vmatpush1.msra.mxu0 %v482
    %v484 = vand.u32 %v119, 4294901760
    %v485 = vsub.f32 %v119, %v484
    %486 = vmatprep.subr.mxu0 %v485
    %v487 = vand.u32 %v118, 4294901760
    %v488 = vsub.f32 %v118, %v487
    %489 = vmatpush1.msra.mxu0 %v488
    %v490 = vand.u32 %v117, 4294901760
    %v491 = vsub.f32 %v117, %v490
    %492 = vmatprep.subr.mxu0 %v491
    %v493 = vand.u32 %v116, 4294901760
    %v494 = vsub.f32 %v116, %v493
    %495 = vmatpush1.msra.mxu0 %v494
    %v496 = vand.u32 %v115, 4294901760
    %v497 = vsub.f32 %v115, %v496
    %498 = vmatprep.subr.mxu0 %v497
    %v499 = vand.u32 %v114, 4294901760
    %v500 = vsub.f32 %v114, %v499
    %501 = vmatpush1.msra.mxu0 %v500
    %v502 = vand.u32 %v113, 4294901760
    %v503 = vsub.f32 %v113, %v502
    %504 = vmatprep.subr.mxu0 %v503
    %v505 = vand.u32 %v112, 4294901760
    %v506 = vsub.f32 %v112, %v505
    %507 = vmatpush1.msra.mxu0 %v506
    %v508 = vand.u32 %v111, 4294901760
    %v509 = vsub.f32 %v111, %v508
    %510 = vmatprep.subr.mxu0 %v509
    %v511 = vand.u32 %v110, 4294901760
    %v512 = vsub.f32 %v110, %v511
    %513 = vmatpush1.msra.mxu0 %v512
    %v514 = vand.u32 %v109, 4294901760
    %v515 = vsub.f32 %v109, %v514
    %516 = vmatprep.subr.mxu0 %v515
    %v517 = vand.u32 %v108, 4294901760
    %v518 = vsub.f32 %v108, %v517
    %519 = vmatpush1.msra.mxu0 %v518
    %v520 = vand.u32 %v107, 4294901760
    %v521 = vsub.f32 %v107, %v520
    %522 = vmatprep.subr.mxu0 %v521
    %v523 = vand.u32 %v106, 4294901760
    %v524 = vsub.f32 %v106, %v523
    %525 = vmatpush1.msra.mxu0 %v524
    %v526 = vand.u32 %v105, 4294901760
    %v527 = vsub.f32 %v105, %v526
    %528 = vmatprep.subr.mxu0 %v527
    %v529 = vand.u32 %v104, 4294901760
    %v530 = vsub.f32 %v104, %v529
    %531 = vmatpush1.msra.mxu0 %v530
    %v532 = vand.u32 %v103, 4294901760
    %v533 = vsub.f32 %v103, %v532
    %534 = vmatprep.subr.mxu0 %v533
    %v535 = vand.u32 %v102, 4294901760
    %v536 = vsub.f32 %v102, %v535
    %537 = vmatpush1.msra.mxu0 %v536
    %v538 = vand.u32 %v101, 4294901760
    %v539 = vsub.f32 %v101, %v538
    %540 = vmatprep.subr.mxu0 %v539
    %v541 = vand.u32 %v100, 4294901760
    %v542 = vsub.f32 %v100, %v541
    %543 = vmatpush1.msra.mxu0 %v542
    %v544 = vand.u32 %v99, 4294901760
    %v545 = vsub.f32 %v99, %v544
    %546 = vmatprep.subr.mxu0 %v545
    %v547 = vand.u32 %v98, 4294901760
    %v548 = vsub.f32 %v98, %v547
    %549 = vmatpush1.msra.mxu0 %v548
    %v550 = vand.u32 %v97, 4294901760
    %v551 = vsub.f32 %v97, %v550
    %552 = vmatprep.subr.mxu0 %v551
    %v553 = vand.u32 %v96, 4294901760
    %v554 = vsub.f32 %v96, %v553
    %555 = vmatpush1.msra.mxu0 %v554
    %v556 = vand.u32 %v95, 4294901760
    %v557 = vsub.f32 %v95, %v556
    %558 = vmatprep.subr.mxu0 %v557
    %v559 = vand.u32 %v94, 4294901760
    %v560 = vsub.f32 %v94, %v559
    %561 = vmatpush1.msra.mxu0 %v560
    %562 = vmatprep.subr.mxu0 0.0
    %563 = vmatpush2.msra.mxu0 0.0
    %564 = vmatprep.subr.mxu0 0.0
    %565 = vmatpush2.msra.mxu0 0.0
    %566 = vmatprep.subr.mxu0 0.0
    %567 = vmatpush2.msra.mxu0 0.0
    %568 = vmatprep.subr.mxu0 0.0
    %569 = vmatpush2.msra.mxu0 0.0
    %570 = vmatprep.subr.mxu0 0.0
    %571 = vmatpush2.msra.mxu0 0.0
    %572 = vmatprep.subr.mxu0 0.0
    %573 = vmatpush2.msra.mxu0 0.0
    %574 = vmatprep.subr.mxu0 0.0
    %575 = vmatpush2.msra.mxu0 0.0
    %576 = vmatprep.subr.mxu0 0.0
    %577 = vmatpush2.msra.mxu0 0.0
    %578 = vmatprep.subr.mxu0 0.0
    %579 = vmatpush2.msra.mxu0 0.0
    %580 = vmatprep.subr.mxu0 0.0
    %581 = vmatpush2.msra.mxu0 0.0
    %582 = vmatprep.subr.mxu0 0.0
    %583 = vmatpush2.msra.mxu0 0.0
    %584 = vmatprep.subr.mxu0 0.0
    %585 = vmatpush2.msra.mxu0 0.0
    %586 = vmatprep.subr.mxu0 0.0
    %587 = vmatpush2.msra.mxu0 0.0
    %588 = vmatprep.subr.mxu0 0.0
    %589 = vmatpush2.msra.mxu0 0.0
    %590 = vmatprep.subr.mxu0 0.0
    %591 = vmatpush2.msra.mxu0 0.0
    %592 = vmatprep.subr.mxu0 0.0
    %593 = vmatpush2.msra.mxu0 0.0
    %594 = vmatprep.mubr.f32.mxu0 0.0
    %v595 = vand.u32 %v93, 4294901760
    %v596 = vsub.f32 %v93, %v595
    %597 = vmatmul.mubr.f32.gmra.mxu0 %v596
    %v598 = vpop.f32.mrf.mxu0
    %v599 = vadd.f32 %v462, %v598
    %v600 = vpop.f32.mrf.mxu0
    %v601 = vadd.f32 %v464, %v600
    %602 = vdwg.mxu0
    %v603 = vand.u32 %v125, 4294901760
    %604 = vmatprep.subr.mxu0 %v603
    %v605 = vand.u32 %v124, 4294901760
    %606 = vmatpush1.msra.mxu0 %v605
    %v607 = vand.u32 %v123, 4294901760
    %608 = vmatprep.subr.mxu0 %v607
    %v609 = vand.u32 %v122, 4294901760
    %610 = vmatpush1.msra.mxu0 %v609
    %v611 = vand.u32 %v121, 4294901760
    %612 = vmatprep.subr.mxu0 %v611
    %v613 = vand.u32 %v120, 4294901760
    %614 = vmatpush1.msra.mxu0 %v613
    %v615 = vand.u32 %v119, 4294901760
    %616 = vmatprep.subr.mxu0 %v615
    %v617 = vand.u32 %v118, 4294901760
    %618 = vmatpush1.msra.mxu0 %v617
    %v619 = vand.u32 %v117, 4294901760
    %620 = vmatprep.subr.mxu0 %v619
    %v621 = vand.u32 %v116, 4294901760
    %622 = vmatpush1.msra.mxu0 %v621
    %v623 = vand.u32 %v115, 4294901760
    %624 = vmatprep.subr.mxu0 %v623
    %v625 = vand.u32 %v114, 4294901760
    %626 = vmatpush1.msra.mxu0 %v625
    %v627 = vand.u32 %v113, 4294901760
    %628 = vmatprep.subr.mxu0 %v627
    %v629 = vand.u32 %v112, 4294901760
    %630 = vmatpush1.msra.mxu0 %v629
    %v631 = vand.u32 %v111, 4294901760
    %632 = vmatprep.subr.mxu0 %v631
    %v633 = vand.u32 %v110, 4294901760
    %634 = vmatpush1.msra.mxu0 %v633
    %v635 = vand.u32 %v109, 4294901760
    %636 = vmatprep.subr.mxu0 %v635
    %v637 = vand.u32 %v108, 4294901760
    %638 = vmatpush1.msra.mxu0 %v637
    %v639 = vand.u32 %v107, 4294901760
    %640 = vmatprep.subr.mxu0 %v639
    %v641 = vand.u32 %v106, 4294901760
    %642 = vmatpush1.msra.mxu0 %v641
    %v643 = vand.u32 %v105, 4294901760
    %644 = vmatprep.subr.mxu0 %v643
    %v645 = vand.u32 %v104, 4294901760
    %646 = vmatpush1.msra.mxu0 %v645
    %v647 = vand.u32 %v103, 4294901760
    %648 = vmatprep.subr.mxu0 %v647
    %v649 = vand.u32 %v102, 4294901760
    %650 = vmatpush1.msra.mxu0 %v649
    %v651 = vand.u32 %v101, 4294901760
    %652 = vmatprep.subr.mxu0 %v651
    %v653 = vand.u32 %v100, 4294901760
    %654 = vmatpush1.msra.mxu0 %v653
    %v655 = vand.u32 %v99, 4294901760
    %656 = vmatprep.subr.mxu0 %v655
    %v657 = vand.u32 %v98, 4294901760
    %658 = vmatpush1.msra.mxu0 %v657
    %v659 = vand.u32 %v97, 4294901760
    %660 = vmatprep.subr.mxu0 %v659
    %v661 = vand.u32 %v96, 4294901760
    %662 = vmatpush1.msra.mxu0 %v661
    %v663 = vand.u32 %v95, 4294901760
    %664 = vmatprep.subr.mxu0 %v663
    %v665 = vand.u32 %v94, 4294901760
    %666 = vmatpush1.msra.mxu0 %v665
    %667 = vmatprep.subr.mxu0 0.0
    %668 = vmatpush2.msra.mxu0 0.0
    %669 = vmatprep.subr.mxu0 0.0
    %670 = vmatpush2.msra.mxu0 0.0
    %671 = vmatprep.subr.mxu0 0.0
    %672 = vmatpush2.msra.mxu0 0.0
    %673 = vmatprep.subr.mxu0 0.0
    %674 = vmatpush2.msra.mxu0 0.0
    %675 = vmatprep.subr.mxu0 0.0
    %676 = vmatpush2.msra.mxu0 0.0
    %677 = vmatprep.subr.mxu0 0.0
    %678 = vmatpush2.msra.mxu0 0.0
    %679 = vmatprep.subr.mxu0 0.0
    %680 = vmatpush2.msra.mxu0 0.0
    %681 = vmatprep.subr.mxu0 0.0
    %682 = vmatpush2.msra.mxu0 0.0
    %683 = vmatprep.subr.mxu0 0.0
    %684 = vmatpush2.msra.mxu0 0.0
    %685 = vmatprep.subr.mxu0 0.0
    %686 = vmatpush2.msra.mxu0 0.0
    %687 = vmatprep.subr.mxu0 0.0
    %688 = vmatpush2.msra.mxu0 0.0
    %689 = vmatprep.subr.mxu0 0.0
    %690 = vmatpush2.msra.mxu0 0.0
    %691 = vmatprep.subr.mxu0 0.0
    %692 = vmatpush2.msra.mxu0 0.0
    %693 = vmatprep.subr.mxu0 0.0
    %694 = vmatpush2.msra.mxu0 0.0
    %695 = vmatprep.subr.mxu0 0.0
    %696 = vmatpush2.msra.mxu0 0.0
    %697 = vmatprep.subr.mxu0 0.0
    %698 = vmatpush2.msra.mxu0 0.0
    %699 = vmatprep.mubr.f32.mxu0 0.0
    %v700 = vand.u32 %v93, 4294901760
    %v701 = vsub.f32 %v93, %v700
    %v702 = vand.u32 %v701, 4294901760
    %703 = vmatmul.mubr.f32.gmra.mxu0 %v702
    %v704 = vpop.f32.mrf.mxu0
    %v705 = vadd.f32 %v599, %v704
    %v706 = vpop.f32.mrf.mxu0
    %v707 = vadd.f32 %v601, %v706
    %708 = vdwg.mxu0
    %v709 = vand.u32 %v125, 4294901760
    %v710 = vsub.f32 %v125, %v709
    %v711 = vand.u32 %v710, 4294901760
    %712 = vmatprep.subr.mxu0 %v711
    %v713 = vand.u32 %v124, 4294901760
    %v714 = vsub.f32 %v124, %v713
    %v715 = vand.u32 %v714, 4294901760
    %716 = vmatpush1.msra.mxu0 %v715
    %v717 = vand.u32 %v123, 4294901760
    %v718 = vsub.f32 %v123, %v717
    %v719 = vand.u32 %v718, 4294901760
    %720 = vmatprep.subr.mxu0 %v719
    %v721 = vand.u32 %v122, 4294901760
    %v722 = vsub.f32 %v122, %v721
    %v723 = vand.u32 %v722, 4294901760
    %724 = vmatpush1.msra.mxu0 %v723
    %v725 = vand.u32 %v121, 4294901760
    %v726 = vsub.f32 %v121, %v725
    %v727 = vand.u32 %v726, 4294901760
    %728 = vmatprep.subr.mxu0 %v727
    %v729 = vand.u32 %v120, 4294901760
    %v730 = vsub.f32 %v120, %v729
    %v731 = vand.u32 %v730, 4294901760
    %732 = vmatpush1.msra.mxu0 %v731
    %v733 = vand.u32 %v119, 4294901760
    %v734 = vsub.f32 %v119, %v733
    %v735 = vand.u32 %v734, 4294901760
    %736 = vmatprep.subr.mxu0 %v735
    %v737 = vand.u32 %v118, 4294901760
    %v738 = vsub.f32 %v118, %v737
    %v739 = vand.u32 %v738, 4294901760
    %740 = vmatpush1.msra.mxu0 %v739
    %v741 = vand.u32 %v117, 4294901760
    %v742 = vsub.f32 %v117, %v741
    %v743 = vand.u32 %v742, 4294901760
    %744 = vmatprep.subr.mxu0 %v743
    %v745 = vand.u32 %v116, 4294901760
    %v746 = vsub.f32 %v116, %v745
    %v747 = vand.u32 %v746, 4294901760
    %748 = vmatpush1.msra.mxu0 %v747
    %v749 = vand.u32 %v115, 4294901760
    %v750 = vsub.f32 %v115, %v749
    %v751 = vand.u32 %v750, 4294901760
    %752 = vmatprep.subr.mxu0 %v751
    %v753 = vand.u32 %v114, 4294901760
    %v754 = vsub.f32 %v114, %v753
    %v755 = vand.u32 %v754, 4294901760
    %756 = vmatpush1.msra.mxu0 %v755
    %v757 = vand.u32 %v113, 4294901760
    %v758 = vsub.f32 %v113, %v757
    %v759 = vand.u32 %v758, 4294901760
    %760 = vmatprep.subr.mxu0 %v759
    %v761 = vand.u32 %v112, 4294901760
    %v762 = vsub.f32 %v112, %v761
    %v763 = vand.u32 %v762, 4294901760
    %764 = vmatpush1.msra.mxu0 %v763
    %v765 = vand.u32 %v111, 4294901760
    %v766 = vsub.f32 %v111, %v765
    %v767 = vand.u32 %v766, 4294901760
    %768 = vmatprep.subr.mxu0 %v767
    %v769 = vand.u32 %v110, 4294901760
    %v770 = vsub.f32 %v110, %v769
    %v771 = vand.u32 %v770, 4294901760
    %772 = vmatpush1.msra.mxu0 %v771
    %v773 = vand.u32 %v109, 4294901760
    %v774 = vsub.f32 %v109, %v773
    %v775 = vand.u32 %v774, 4294901760
    %776 = vmatprep.subr.mxu0 %v775
    %v777 = vand.u32 %v108, 4294901760
    %v778 = vsub.f32 %v108, %v777
    %v779 = vand.u32 %v778, 4294901760
    %780 = vmatpush1.msra.mxu0 %v779
    %v781 = vand.u32 %v107, 4294901760
    %v782 = vsub.f32 %v107, %v781
    %v783 = vand.u32 %v782, 4294901760
    %784 = vmatprep.subr.mxu0 %v783
    %v785 = vand.u32 %v106, 4294901760
    %v786 = vsub.f32 %v106, %v785
    %v787 = vand.u32 %v786, 4294901760
    %788 = vmatpush1.msra.mxu0 %v787
    %v789 = vand.u32 %v105, 4294901760
    %v790 = vsub.f32 %v105, %v789
    %v791 = vand.u32 %v790, 4294901760
    %792 = vmatprep.subr.mxu0 %v791
    %v793 = vand.u32 %v104, 4294901760
    %v794 = vsub.f32 %v104, %v793
    %v795 = vand.u32 %v794, 4294901760
    %796 = vmatpush1.msra.mxu0 %v795
    %v797 = vand.u32 %v103, 4294901760
    %v798 = vsub.f32 %v103, %v797
    %v799 = vand.u32 %v798, 4294901760
    %800 = vmatprep.subr.mxu0 %v799
    %v801 = vand.u32 %v102, 4294901760
    %v802 = vsub.f32 %v102, %v801
    %v803 = vand.u32 %v802, 4294901760
    %804 = vmatpush1.msra.mxu0 %v803
    %v805 = vand.u32 %v101, 4294901760
    %v806 = vsub.f32 %v101, %v805
    %v807 = vand.u32 %v806, 4294901760
    %808 = vmatprep.subr.mxu0 %v807
    %v809 = vand.u32 %v100, 4294901760
    %v810 = vsub.f32 %v100, %v809
    %v811 = vand.u32 %v810, 4294901760
    %812 = vmatpush1.msra.mxu0 %v811
    %v813 = vand.u32 %v99, 4294901760
    %v814 = vsub.f32 %v99, %v813
    %v815 = vand.u32 %v814, 4294901760
    %816 = vmatprep.subr.mxu0 %v815
    %v817 = vand.u32 %v98, 4294901760
    %v818 = vsub.f32 %v98, %v817
    %v819 = vand.u32 %v818, 4294901760
    %820 = vmatpush1.msra.mxu0 %v819
    %v821 = vand.u32 %v97, 4294901760
    %v822 = vsub.f32 %v97, %v821
    %v823 = vand.u32 %v822, 4294901760
    %824 = vmatprep.subr.mxu0 %v823
    %v825 = vand.u32 %v96, 4294901760
    %v826 = vsub.f32 %v96, %v825
    %v827 = vand.u32 %v826, 4294901760
    %828 = vmatpush1.msra.mxu0 %v827
    %v829 = vand.u32 %v95, 4294901760
    %v830 = vsub.f32 %v95, %v829
    %v831 = vand.u32 %v830, 4294901760
    %832 = vmatprep.subr.mxu0 %v831
    %v833 = vand.u32 %v94, 4294901760
    %v834 = vsub.f32 %v94, %v833
    %v835 = vand.u32 %v834, 4294901760
    %836 = vmatpush1.msra.mxu0 %v835
    %837 = vmatprep.subr.mxu0 0.0
    %838 = vmatpush2.msra.mxu0 0.0
    %839 = vmatprep.subr.mxu0 0.0
    %840 = vmatpush2.msra.mxu0 0.0
    %841 = vmatprep.subr.mxu0 0.0
    %842 = vmatpush2.msra.mxu0 0.0
    %843 = vmatprep.subr.mxu0 0.0
    %844 = vmatpush2.msra.mxu0 0.0
    %845 = vmatprep.subr.mxu0 0.0
    %846 = vmatpush2.msra.mxu0 0.0
    %847 = vmatprep.subr.mxu0 0.0
    %848 = vmatpush2.msra.mxu0 0.0
    %849 = vmatprep.subr.mxu0 0.0
    %850 = vmatpush2.msra.mxu0 0.0
    %851 = vmatprep.subr.mxu0 0.0
    %852 = vmatpush2.msra.mxu0 0.0
    %853 = vmatprep.subr.mxu0 0.0
    %854 = vmatpush2.msra.mxu0 0.0
    %855 = vmatprep.subr.mxu0 0.0
    %856 = vmatpush2.msra.mxu0 0.0
    %857 = vmatprep.subr.mxu0 0.0
    %858 = vmatpush2.msra.mxu0 0.0
    %859 = vmatprep.subr.mxu0 0.0
    %860 = vmatpush2.msra.mxu0 0.0
    %861 = vmatprep.subr.mxu0 0.0
    %862 = vmatpush2.msra.mxu0 0.0
    %863 = vmatprep.subr.mxu0 0.0
    %864 = vmatpush2.msra.mxu0 0.0
    %865 = vmatprep.subr.mxu0 0.0
    %866 = vmatpush2.msra.mxu0 0.0
    %867 = vmatprep.subr.mxu0 0.0
    %868 = vmatpush2.msra.mxu0 0.0
    %869 = vmatprep.mubr.f32.mxu0 0.0
    %v870 = vand.u32 %v93, 4294901760
    %871 = vmatmul.mubr.f32.gmra.mxu0 %v870
    %v872 = vpop.f32.mrf.mxu0
    %v873 = vadd.f32 %v705, %v872
    %v874 = vpop.f32.mrf.mxu0
    %v875 = vadd.f32 %v707, %v874
    %876 = vdwg.mxu0
    %v877 = vand.u32 %v125, 4294901760
    %878 = vmatprep.subr.mxu0 %v877
    %v879 = vand.u32 %v124, 4294901760
    %880 = vmatpush1.msra.mxu0 %v879
    %v881 = vand.u32 %v123, 4294901760
    %882 = vmatprep.subr.mxu0 %v881
    %v883 = vand.u32 %v122, 4294901760
    %884 = vmatpush1.msra.mxu0 %v883
    %v885 = vand.u32 %v121, 4294901760
    %886 = vmatprep.subr.mxu0 %v885
    %v887 = vand.u32 %v120, 4294901760
    %888 = vmatpush1.msra.mxu0 %v887
    %v889 = vand.u32 %v119, 4294901760
    %890 = vmatprep.subr.mxu0 %v889
    %v891 = vand.u32 %v118, 4294901760
    %892 = vmatpush1.msra.mxu0 %v891
    %v893 = vand.u32 %v117, 4294901760
    %894 = vmatprep.subr.mxu0 %v893
    %v895 = vand.u32 %v116, 4294901760
    %896 = vmatpush1.msra.mxu0 %v895
    %v897 = vand.u32 %v115, 4294901760
    %898 = vmatprep.subr.mxu0 %v897
    %v899 = vand.u32 %v114, 4294901760
    %900 = vmatpush1.msra.mxu0 %v899
    %v901 = vand.u32 %v113, 4294901760
    %902 = vmatprep.subr.mxu0 %v901
    %v903 = vand.u32 %v112, 4294901760
    %904 = vmatpush1.msra.mxu0 %v903
    %v905 = vand.u32 %v111, 4294901760
    %906 = vmatprep.subr.mxu0 %v905
    %v907 = vand.u32 %v110, 4294901760
    %908 = vmatpush1.msra.mxu0 %v907
    %v909 = vand.u32 %v109, 4294901760
    %910 = vmatprep.subr.mxu0 %v909
    %v911 = vand.u32 %v108, 4294901760
    %912 = vmatpush1.msra.mxu0 %v911
    %v913 = vand.u32 %v107, 4294901760
    %914 = vmatprep.subr.mxu0 %v913
    %v915 = vand.u32 %v106, 4294901760
    %916 = vmatpush1.msra.mxu0 %v915
    %v917 = vand.u32 %v105, 4294901760
    %918 = vmatprep.subr.mxu0 %v917
    %v919 = vand.u32 %v104, 4294901760
    %920 = vmatpush1.msra.mxu0 %v919
    %v921 = vand.u32 %v103, 4294901760
    %922 = vmatprep.subr.mxu0 %v921
    %v923 = vand.u32 %v102, 4294901760
    %924 = vmatpush1.msra.mxu0 %v923
    %v925 = vand.u32 %v101, 4294901760
    %926 = vmatprep.subr.mxu0 %v925
    %v927 = vand.u32 %v100, 4294901760
    %928 = vmatpush1.msra.mxu0 %v927
    %v929 = vand.u32 %v99, 4294901760
    %930 = vmatprep.subr.mxu0 %v929
    %v931 = vand.u32 %v98, 4294901760
    %932 = vmatpush1.msra.mxu0 %v931
    %v933 = vand.u32 %v97, 4294901760
    %934 = vmatprep.subr.mxu0 %v933
    %v935 = vand.u32 %v96, 4294901760
    %936 = vmatpush1.msra.mxu0 %v935
    %v937 = vand.u32 %v95, 4294901760
    %938 = vmatprep.subr.mxu0 %v937
    %v939 = vand.u32 %v94, 4294901760
    %940 = vmatpush1.msra.mxu0 %v939
    %941 = vmatprep.subr.mxu0 0.0
    %942 = vmatpush2.msra.mxu0 0.0
    %943 = vmatprep.subr.mxu0 0.0
    %944 = vmatpush2.msra.mxu0 0.0
    %945 = vmatprep.subr.mxu0 0.0
    %946 = vmatpush2.msra.mxu0 0.0
    %947 = vmatprep.subr.mxu0 0.0
    %948 = vmatpush2.msra.mxu0 0.0
    %949 = vmatprep.subr.mxu0 0.0
    %950 = vmatpush2.msra.mxu0 0.0
    %951 = vmatprep.subr.mxu0 0.0
    %952 = vmatpush2.msra.mxu0 0.0
    %953 = vmatprep.subr.mxu0 0.0
    %954 = vmatpush2.msra.mxu0 0.0
    %955 = vmatprep.subr.mxu0 0.0
    %956 = vmatpush2.msra.mxu0 0.0
    %957 = vmatprep.subr.mxu0 0.0
    %958 = vmatpush2.msra.mxu0 0.0
    %959 = vmatprep.subr.mxu0 0.0
    %960 = vmatpush2.msra.mxu0 0.0
    %961 = vmatprep.subr.mxu0 0.0
    %962 = vmatpush2.msra.mxu0 0.0
    %963 = vmatprep.subr.mxu0 0.0
    %964 = vmatpush2.msra.mxu0 0.0
    %965 = vmatprep.subr.mxu0 0.0
    %966 = vmatpush2.msra.mxu0 0.0
    %967 = vmatprep.subr.mxu0 0.0
    %968 = vmatpush2.msra.mxu0 0.0
    %969 = vmatprep.subr.mxu0 0.0
    %970 = vmatpush2.msra.mxu0 0.0
    %971 = vmatprep.subr.mxu0 0.0
    %972 = vmatpush2.msra.mxu0 0.0
    %973 = vmatprep.mubr.f32.mxu0 0.0
    %v974 = vand.u32 %v93, 4294901760
    %975 = vmatmul.mubr.f32.gmra.mxu0 %v974
    %v976 = vpop.f32.mrf.mxu0
    %v977 = vadd.f32 %v873, %v976
    %v978 = vpop.f32.mrf.mxu0
    %v979 = vadd.f32 %v875, %v978
    %980 = vdwg.mxu0
    %v981 = vand.u32 %v92, 4294901760
    %982 = vmatprep.subr.mxu0 %v981
    %v983 = vand.u32 %v91, 4294901760
    %984 = vmatpush1.msra.mxu0 %v983
    %v985 = vand.u32 %v90, 4294901760
    %986 = vmatprep.subr.mxu0 %v985
    %v987 = vand.u32 %v89, 4294901760
    %988 = vmatpush1.msra.mxu0 %v987
    %v989 = vand.u32 %v88, 4294901760
    %990 = vmatprep.subr.mxu0 %v989
    %v991 = vand.u32 %v87, 4294901760
    %992 = vmatpush1.msra.mxu0 %v991
    %v993 = vand.u32 %v86, 4294901760
    %994 = vmatprep.subr.mxu0 %v993
    %v995 = vand.u32 %v85, 4294901760
    %996 = vmatpush1.msra.mxu0 %v995
    %v997 = vand.u32 %v84, 4294901760
    %998 = vmatprep.subr.mxu0 %v997
    %v999 = vand.u32 %v83, 4294901760
    %1000 = vmatpush1.msra.mxu0 %v999
    %v1001 = vand.u32 %v82, 4294901760
    %1002 = vmatprep.subr.mxu0 %v1001
    %v1003 = vand.u32 %v81, 4294901760
    %1004 = vmatpush1.msra.mxu0 %v1003
    %v1005 = vand.u32 %v80, 4294901760
    %1006 = vmatprep.subr.mxu0 %v1005
    %v1007 = vand.u32 %v79, 4294901760
    %1008 = vmatpush1.msra.mxu0 %v1007
    %v1009 = vand.u32 %v78, 4294901760
    %1010 = vmatprep.subr.mxu0 %v1009
    %v1011 = vand.u32 %v77, 4294901760
    %1012 = vmatpush1.msra.mxu0 %v1011
    %v1013 = vand.u32 %v76, 4294901760
    %1014 = vmatprep.subr.mxu0 %v1013
    %v1015 = vand.u32 %v75, 4294901760
    %1016 = vmatpush1.msra.mxu0 %v1015
    %v1017 = vand.u32 %v74, 4294901760
    %1018 = vmatprep.subr.mxu0 %v1017
    %v1019 = vand.u32 %v73, 4294901760
    %1020 = vmatpush1.msra.mxu0 %v1019
    %v1021 = vand.u32 %v72, 4294901760
    %1022 = vmatprep.subr.mxu0 %v1021
    %v1023 = vand.u32 %v71, 4294901760
    %1024 = vmatpush1.msra.mxu0 %v1023
    %v1025 = vand.u32 %v70, 4294901760
    %1026 = vmatprep.subr.mxu0 %v1025
    %v1027 = vand.u32 %v69, 4294901760
    %1028 = vmatpush1.msra.mxu0 %v1027
    %v1029 = vand.u32 %v68, 4294901760
    %1030 = vmatprep.subr.mxu0 %v1029
    %v1031 = vand.u32 %v67, 4294901760
    %1032 = vmatpush1.msra.mxu0 %v1031
    %v1033 = vand.u32 %v66, 4294901760
    %1034 = vmatprep.subr.mxu0 %v1033
    %v1035 = vand.u32 %v65, 4294901760
    %1036 = vmatpush1.msra.mxu0 %v1035
    %v1037 = vand.u32 %v64, 4294901760
    %1038 = vmatprep.subr.mxu0 %v1037
    %v1039 = vand.u32 %v63, 4294901760
    %1040 = vmatpush1.msra.mxu0 %v1039
    %v1041 = vand.u32 %v62, 4294901760
    %1042 = vmatprep.subr.mxu0 %v1041
    %v1043 = vand.u32 %v61, 4294901760
    %1044 = vmatpush1.msra.mxu0 %v1043
    %1045 = vmatprep.subr.mxu0 0.0
    %1046 = vmatpush2.msra.mxu0 0.0
    %1047 = vmatprep.subr.mxu0 0.0
    %1048 = vmatpush2.msra.mxu0 0.0
    %1049 = vmatprep.subr.mxu0 0.0
    %1050 = vmatpush2.msra.mxu0 0.0
    %1051 = vmatprep.subr.mxu0 0.0
    %1052 = vmatpush2.msra.mxu0 0.0
    %1053 = vmatprep.subr.mxu0 0.0
    %1054 = vmatpush2.msra.mxu0 0.0
    %1055 = vmatprep.subr.mxu0 0.0
    %1056 = vmatpush2.msra.mxu0 0.0
    %1057 = vmatprep.subr.mxu0 0.0
    %1058 = vmatpush2.msra.mxu0 0.0
    %1059 = vmatprep.subr.mxu0 0.0
    %1060 = vmatpush2.msra.mxu0 0.0
    %1061 = vmatprep.subr.mxu0 0.0
    %1062 = vmatpush2.msra.mxu0 0.0
    %1063 = vmatprep.subr.mxu0 0.0
    %1064 = vmatpush2.msra.mxu0 0.0
    %1065 = vmatprep.subr.mxu0 0.0
    %1066 = vmatpush2.msra.mxu0 0.0
    %1067 = vmatprep.subr.mxu0 0.0
    %1068 = vmatpush2.msra.mxu0 0.0
    %1069 = vmatprep.subr.mxu0 0.0
    %1070 = vmatpush2.msra.mxu0 0.0
    %1071 = vmatprep.subr.mxu0 0.0
    %1072 = vmatpush2.msra.mxu0 0.0
    %1073 = vmatprep.subr.mxu0 0.0
    %1074 = vmatpush2.msra.mxu0 0.0
    %1075 = vmatprep.subr.mxu0 0.0
    %1076 = vmatpush2.msra.mxu0 0.0
    %1077 = vmatprep.mubr.f32.mxu0 0.0
    %v1078 = vand.u32 %v60, 4294901760
    %v1079 = vsub.f32 %v60, %v1078
    %v1080 = vand.u32 %v1079, 4294901760
    %v1081 = vsub.f32 %v1079, %v1080
    %v1082 = vand.u32 %v1081, 4294901760
    %1083 = vmatmul.mubr.f32.gmra.mxu0 %v1082
    %v1084 = vpop.f32.mrf.mxu0
    %v1085 = vadd.f32 %v977, %v1084
    %v1086 = vpop.f32.mrf.mxu0
    %v1087 = vadd.f32 %v979, %v1086
    %1088 = vdwg.mxu0
    %v1089 = vand.u32 %v92, 4294901760
    %v1090 = vsub.f32 %v92, %v1089
    %v1091 = vand.u32 %v1090, 4294901760
    %v1092 = vsub.f32 %v1090, %v1091
    %v1093 = vand.u32 %v1092, 4294901760
    %1094 = vmatprep.subr.mxu0 %v1093
    %v1095 = vand.u32 %v91, 4294901760
    %v1096 = vsub.f32 %v91, %v1095
    %v1097 = vand.u32 %v1096, 4294901760
    %v1098 = vsub.f32 %v1096, %v1097
    %v1099 = vand.u32 %v1098, 4294901760
    %1100 = vmatpush1.msra.mxu0 %v1099
    %v1101 = vand.u32 %v90, 4294901760
    %v1102 = vsub.f32 %v90, %v1101
    %v1103 = vand.u32 %v1102, 4294901760
    %v1104 = vsub.f32 %v1102, %v1103
    %v1105 = vand.u32 %v1104, 4294901760
    %1106 = vmatprep.subr.mxu0 %v1105
    %v1107 = vand.u32 %v89, 4294901760
    %v1108 = vsub.f32 %v89, %v1107
    %v1109 = vand.u32 %v1108, 4294901760
    %v1110 = vsub.f32 %v1108, %v1109
    %v1111 = vand.u32 %v1110, 4294901760
    %1112 = vmatpush1.msra.mxu0 %v1111
    %v1113 = vand.u32 %v88, 4294901760
    %v1114 = vsub.f32 %v88, %v1113
    %v1115 = vand.u32 %v1114, 4294901760
    %v1116 = vsub.f32 %v1114, %v1115
    %v1117 = vand.u32 %v1116, 4294901760
    %1118 = vmatprep.subr.mxu0 %v1117
    %v1119 = vand.u32 %v87, 4294901760
    %v1120 = vsub.f32 %v87, %v1119
    %v1121 = vand.u32 %v1120, 4294901760
    %v1122 = vsub.f32 %v1120, %v1121
    %v1123 = vand.u32 %v1122, 4294901760
    %1124 = vmatpush1.msra.mxu0 %v1123
    %v1125 = vand.u32 %v86, 4294901760
    %v1126 = vsub.f32 %v86, %v1125
    %v1127 = vand.u32 %v1126, 4294901760
    %v1128 = vsub.f32 %v1126, %v1127
    %v1129 = vand.u32 %v1128, 4294901760
    %1130 = vmatprep.subr.mxu0 %v1129
    %v1131 = vand.u32 %v85, 4294901760
    %v1132 = vsub.f32 %v85, %v1131
    %v1133 = vand.u32 %v1132, 4294901760
    %v1134 = vsub.f32 %v1132, %v1133
    %v1135 = vand.u32 %v1134, 4294901760
    %1136 = vmatpush1.msra.mxu0 %v1135
    %v1137 = vand.u32 %v84, 4294901760
    %v1138 = vsub.f32 %v84, %v1137
    %v1139 = vand.u32 %v1138, 4294901760
    %v1140 = vsub.f32 %v1138, %v1139
    %v1141 = vand.u32 %v1140, 4294901760
    %1142 = vmatprep.subr.mxu0 %v1141
    %v1143 = vand.u32 %v83, 4294901760
    %v1144 = vsub.f32 %v83, %v1143
    %v1145 = vand.u32 %v1144, 4294901760
    %v1146 = vsub.f32 %v1144, %v1145
    %v1147 = vand.u32 %v1146, 4294901760
    %1148 = vmatpush1.msra.mxu0 %v1147
    %v1149 = vand.u32 %v82, 4294901760
    %v1150 = vsub.f32 %v82, %v1149
    %v1151 = vand.u32 %v1150, 4294901760
    %v1152 = vsub.f32 %v1150, %v1151
    %v1153 = vand.u32 %v1152, 4294901760
    %1154 = vmatprep.subr.mxu0 %v1153
    %v1155 = vand.u32 %v81, 4294901760
    %v1156 = vsub.f32 %v81, %v1155
    %v1157 = vand.u32 %v1156, 4294901760
    %v1158 = vsub.f32 %v1156, %v1157
    %v1159 = vand.u32 %v1158, 4294901760
    %1160 = vmatpush1.msra.mxu0 %v1159
    %v1161 = vand.u32 %v80, 4294901760
    %v1162 = vsub.f32 %v80, %v1161
    %v1163 = vand.u32 %v1162, 4294901760
    %v1164 = vsub.f32 %v1162, %v1163
    %v1165 = vand.u32 %v1164, 4294901760
    %1166 = vmatprep.subr.mxu0 %v1165
    %v1167 = vand.u32 %v79, 4294901760
    %v1168 = vsub.f32 %v79, %v1167
    %v1169 = vand.u32 %v1168, 4294901760
    %v1170 = vsub.f32 %v1168, %v1169
    %v1171 = vand.u32 %v1170, 4294901760
    %1172 = vmatpush1.msra.mxu0 %v1171
    %v1173 = vand.u32 %v78, 4294901760
    %v1174 = vsub.f32 %v78, %v1173
    %v1175 = vand.u32 %v1174, 4294901760
    %v1176 = vsub.f32 %v1174, %v1175
    %v1177 = vand.u32 %v1176, 4294901760
    %1178 = vmatprep.subr.mxu0 %v1177
    %v1179 = vand.u32 %v77, 4294901760
    %v1180 = vsub.f32 %v77, %v1179
    %v1181 = vand.u32 %v1180, 4294901760
    %v1182 = vsub.f32 %v1180, %v1181
    %v1183 = vand.u32 %v1182, 4294901760
    %1184 = vmatpush1.msra.mxu0 %v1183
    %v1185 = vand.u32 %v76, 4294901760
    %v1186 = vsub.f32 %v76, %v1185
    %v1187 = vand.u32 %v1186, 4294901760
    %v1188 = vsub.f32 %v1186, %v1187
    %v1189 = vand.u32 %v1188, 4294901760
    %1190 = vmatprep.subr.mxu0 %v1189
    %v1191 = vand.u32 %v75, 4294901760
    %v1192 = vsub.f32 %v75, %v1191
    %v1193 = vand.u32 %v1192, 4294901760
    %v1194 = vsub.f32 %v1192, %v1193
    %v1195 = vand.u32 %v1194, 4294901760
    %1196 = vmatpush1.msra.mxu0 %v1195
    %v1197 = vand.u32 %v74, 4294901760
    %v1198 = vsub.f32 %v74, %v1197
    %v1199 = vand.u32 %v1198, 4294901760
    %v1200 = vsub.f32 %v1198, %v1199
    %v1201 = vand.u32 %v1200, 4294901760
    %1202 = vmatprep.subr.mxu0 %v1201
    %v1203 = vand.u32 %v73, 4294901760
    %v1204 = vsub.f32 %v73, %v1203
    %v1205 = vand.u32 %v1204, 4294901760
    %v1206 = vsub.f32 %v1204, %v1205
    %v1207 = vand.u32 %v1206, 4294901760
    %1208 = vmatpush1.msra.mxu0 %v1207
    %v1209 = vand.u32 %v72, 4294901760
    %v1210 = vsub.f32 %v72, %v1209
    %v1211 = vand.u32 %v1210, 4294901760
    %v1212 = vsub.f32 %v1210, %v1211
    %v1213 = vand.u32 %v1212, 4294901760
    %1214 = vmatprep.subr.mxu0 %v1213
    %v1215 = vand.u32 %v71, 4294901760
    %v1216 = vsub.f32 %v71, %v1215
    %v1217 = vand.u32 %v1216, 4294901760
    %v1218 = vsub.f32 %v1216, %v1217
    %v1219 = vand.u32 %v1218, 4294901760
    %1220 = vmatpush1.msra.mxu0 %v1219
    %v1221 = vand.u32 %v70, 4294901760
    %v1222 = vsub.f32 %v70, %v1221
    %v1223 = vand.u32 %v1222, 4294901760
    %v1224 = vsub.f32 %v1222, %v1223
    %v1225 = vand.u32 %v1224, 4294901760
    %1226 = vmatprep.subr.mxu0 %v1225
    %v1227 = vand.u32 %v69, 4294901760
    %v1228 = vsub.f32 %v69, %v1227
    %v1229 = vand.u32 %v1228, 4294901760
    %v1230 = vsub.f32 %v1228, %v1229
    %v1231 = vand.u32 %v1230, 4294901760
    %1232 = vmatpush1.msra.mxu0 %v1231
    %v1233 = vand.u32 %v68, 4294901760
    %v1234 = vsub.f32 %v68, %v1233
    %v1235 = vand.u32 %v1234, 4294901760
    %v1236 = vsub.f32 %v1234, %v1235
    %v1237 = vand.u32 %v1236, 4294901760
    %1238 = vmatprep.subr.mxu0 %v1237
    %v1239 = vand.u32 %v67, 4294901760
    %v1240 = vsub.f32 %v67, %v1239
    %v1241 = vand.u32 %v1240, 4294901760
    %v1242 = vsub.f32 %v1240, %v1241
    %v1243 = vand.u32 %v1242, 4294901760
    %1244 = vmatpush1.msra.mxu0 %v1243
    %v1245 = vand.u32 %v66, 4294901760
    %v1246 = vsub.f32 %v66, %v1245
    %v1247 = vand.u32 %v1246, 4294901760
    %v1248 = vsub.f32 %v1246, %v1247
    %v1249 = vand.u32 %v1248, 4294901760
    %1250 = vmatprep.subr.mxu0 %v1249
    %v1251 = vand.u32 %v65, 4294901760
    %v1252 = vsub.f32 %v65, %v1251
    %v1253 = vand.u32 %v1252, 4294901760
    %v1254 = vsub.f32 %v1252, %v1253
    %v1255 = vand.u32 %v1254, 4294901760
    %1256 = vmatpush1.msra.mxu0 %v1255
    %v1257 = vand.u32 %v64, 4294901760
    %v1258 = vsub.f32 %v64, %v1257
    %v1259 = vand.u32 %v1258, 4294901760
    %v1260 = vsub.f32 %v1258, %v1259
    %v1261 = vand.u32 %v1260, 4294901760
    %1262 = vmatprep.subr.mxu0 %v1261
    %v1263 = vand.u32 %v63, 4294901760
    %v1264 = vsub.f32 %v63, %v1263
    %v1265 = vand.u32 %v1264, 4294901760
    %v1266 = vsub.f32 %v1264, %v1265
    %v1267 = vand.u32 %v1266, 4294901760
    %1268 = vmatpush1.msra.mxu0 %v1267
    %v1269 = vand.u32 %v62, 4294901760
    %v1270 = vsub.f32 %v62, %v1269
    %v1271 = vand.u32 %v1270, 4294901760
    %v1272 = vsub.f32 %v1270, %v1271
    %v1273 = vand.u32 %v1272, 4294901760
    %1274 = vmatprep.subr.mxu0 %v1273
    %v1275 = vand.u32 %v61, 4294901760
    %v1276 = vsub.f32 %v61, %v1275
    %v1277 = vand.u32 %v1276, 4294901760
    %v1278 = vsub.f32 %v1276, %v1277
    %v1279 = vand.u32 %v1278, 4294901760
    %1280 = vmatpush1.msra.mxu0 %v1279
    %1281 = vmatprep.subr.mxu0 0.0
    %1282 = vmatpush2.msra.mxu0 0.0
    %1283 = vmatprep.subr.mxu0 0.0
    %1284 = vmatpush2.msra.mxu0 0.0
    %1285 = vmatprep.subr.mxu0 0.0
    %1286 = vmatpush2.msra.mxu0 0.0
    %1287 = vmatprep.subr.mxu0 0.0
    %1288 = vmatpush2.msra.mxu0 0.0
    %1289 = vmatprep.subr.mxu0 0.0
    %1290 = vmatpush2.msra.mxu0 0.0
    %1291 = vmatprep.subr.mxu0 0.0
    %1292 = vmatpush2.msra.mxu0 0.0
    %1293 = vmatprep.subr.mxu0 0.0
    %1294 = vmatpush2.msra.mxu0 0.0
    %1295 = vmatprep.subr.mxu0 0.0
    %1296 = vmatpush2.msra.mxu0 0.0
    %1297 = vmatprep.subr.mxu0 0.0
    %1298 = vmatpush2.msra.mxu0 0.0
    %1299 = vmatprep.subr.mxu0 0.0
    %1300 = vmatpush2.msra.mxu0 0.0
    %1301 = vmatprep.subr.mxu0 0.0
    %1302 = vmatpush2.msra.mxu0 0.0
    %1303 = vmatprep.subr.mxu0 0.0
    %1304 = vmatpush2.msra.mxu0 0.0
    %1305 = vmatprep.subr.mxu0 0.0
    %1306 = vmatpush2.msra.mxu0 0.0
    %1307 = vmatprep.subr.mxu0 0.0
    %1308 = vmatpush2.msra.mxu0 0.0
    %1309 = vmatprep.subr.mxu0 0.0
    %1310 = vmatpush2.msra.mxu0 0.0
    %1311 = vmatprep.subr.mxu0 0.0
    %1312 = vmatpush2.msra.mxu0 0.0
    %1313 = vmatprep.mubr.f32.mxu0 0.0
    %v1314 = vand.u32 %v60, 4294901760
    %1315 = vmatmul.mubr.f32.gmra.mxu0 %v1314
    %v1316 = vpop.f32.mrf.mxu0
    %v1317 = vadd.f32 %v1085, %v1316
    %v1318 = vpop.f32.mrf.mxu0
    %v1319 = vadd.f32 %v1087, %v1318
    %1320 = vdwg.mxu0
    %v1321 = vand.u32 %v92, 4294901760
    %v1322 = vsub.f32 %v92, %v1321
    %1323 = vmatprep.subr.mxu0 %v1322
    %v1324 = vand.u32 %v91, 4294901760
    %v1325 = vsub.f32 %v91, %v1324
    %1326 = vmatpush1.msra.mxu0 %v1325
    %v1327 = vand.u32 %v90, 4294901760
    %v1328 = vsub.f32 %v90, %v1327
    %1329 = vmatprep.subr.mxu0 %v1328
    %v1330 = vand.u32 %v89, 4294901760
    %v1331 = vsub.f32 %v89, %v1330
    %1332 = vmatpush1.msra.mxu0 %v1331
    %v1333 = vand.u32 %v88, 4294901760
    %v1334 = vsub.f32 %v88, %v1333
    %1335 = vmatprep.subr.mxu0 %v1334
    %v1336 = vand.u32 %v87, 4294901760
    %v1337 = vsub.f32 %v87, %v1336
    %1338 = vmatpush1.msra.mxu0 %v1337
    %v1339 = vand.u32 %v86, 4294901760
    %v1340 = vsub.f32 %v86, %v1339
    %1341 = vmatprep.subr.mxu0 %v1340
    %v1342 = vand.u32 %v85, 4294901760
    %v1343 = vsub.f32 %v85, %v1342
    %1344 = vmatpush1.msra.mxu0 %v1343
    %v1345 = vand.u32 %v84, 4294901760
    %v1346 = vsub.f32 %v84, %v1345
    %1347 = vmatprep.subr.mxu0 %v1346
    %v1348 = vand.u32 %v83, 4294901760
    %v1349 = vsub.f32 %v83, %v1348
    %1350 = vmatpush1.msra.mxu0 %v1349
    %v1351 = vand.u32 %v82, 4294901760
    %v1352 = vsub.f32 %v82, %v1351
    %1353 = vmatprep.subr.mxu0 %v1352
    %v1354 = vand.u32 %v81, 4294901760
    %v1355 = vsub.f32 %v81, %v1354
    %1356 = vmatpush1.msra.mxu0 %v1355
    %v1357 = vand.u32 %v80, 4294901760
    %v1358 = vsub.f32 %v80, %v1357
    %1359 = vmatprep.subr.mxu0 %v1358
    %v1360 = vand.u32 %v79, 4294901760
    %v1361 = vsub.f32 %v79, %v1360
    %1362 = vmatpush1.msra.mxu0 %v1361
    %v1363 = vand.u32 %v78, 4294901760
    %v1364 = vsub.f32 %v78, %v1363
    %1365 = vmatprep.subr.mxu0 %v1364
    %v1366 = vand.u32 %v77, 4294901760
    %v1367 = vsub.f32 %v77, %v1366
    %1368 = vmatpush1.msra.mxu0 %v1367
    %v1369 = vand.u32 %v76, 4294901760
    %v1370 = vsub.f32 %v76, %v1369
    %1371 = vmatprep.subr.mxu0 %v1370
    %v1372 = vand.u32 %v75, 4294901760
    %v1373 = vsub.f32 %v75, %v1372
    %1374 = vmatpush1.msra.mxu0 %v1373
    %v1375 = vand.u32 %v74, 4294901760
    %v1376 = vsub.f32 %v74, %v1375
    %1377 = vmatprep.subr.mxu0 %v1376
    %v1378 = vand.u32 %v73, 4294901760
    %v1379 = vsub.f32 %v73, %v1378
    %1380 = vmatpush1.msra.mxu0 %v1379
    %v1381 = vand.u32 %v72, 4294901760
    %v1382 = vsub.f32 %v72, %v1381
    %1383 = vmatprep.subr.mxu0 %v1382
    %v1384 = vand.u32 %v71, 4294901760
    %v1385 = vsub.f32 %v71, %v1384
    %1386 = vmatpush1.msra.mxu0 %v1385
    %v1387 = vand.u32 %v70, 4294901760
    %v1388 = vsub.f32 %v70, %v1387
    %1389 = vmatprep.subr.mxu0 %v1388
    %v1390 = vand.u32 %v69, 4294901760
    %v1391 = vsub.f32 %v69, %v1390
    %1392 = vmatpush1.msra.mxu0 %v1391
    %v1393 = vand.u32 %v68, 4294901760
    %v1394 = vsub.f32 %v68, %v1393
    %1395 = vmatprep.subr.mxu0 %v1394
    %v1396 = vand.u32 %v67, 4294901760
    %v1397 = vsub.f32 %v67, %v1396
    %1398 = vmatpush1.msra.mxu0 %v1397
    %v1399 = vand.u32 %v66, 4294901760
    %v1400 = vsub.f32 %v66, %v1399
    %1401 = vmatprep.subr.mxu0 %v1400
    %v1402 = vand.u32 %v65, 4294901760
    %v1403 = vsub.f32 %v65, %v1402
    %1404 = vmatpush1.msra.mxu0 %v1403
    %v1405 = vand.u32 %v64, 4294901760
    %v1406 = vsub.f32 %v64, %v1405
    %1407 = vmatprep.subr.mxu0 %v1406
    %v1408 = vand.u32 %v63, 4294901760
    %v1409 = vsub.f32 %v63, %v1408
    %1410 = vmatpush1.msra.mxu0 %v1409
    %v1411 = vand.u32 %v62, 4294901760
    %v1412 = vsub.f32 %v62, %v1411
    %1413 = vmatprep.subr.mxu0 %v1412
    %v1414 = vand.u32 %v61, 4294901760
    %v1415 = vsub.f32 %v61, %v1414
    %1416 = vmatpush1.msra.mxu0 %v1415
    %1417 = vmatprep.subr.mxu0 0.0
    %1418 = vmatpush2.msra.mxu0 0.0
    %1419 = vmatprep.subr.mxu0 0.0
    %1420 = vmatpush2.msra.mxu0 0.0
    %1421 = vmatprep.subr.mxu0 0.0
    %1422 = vmatpush2.msra.mxu0 0.0
    %1423 = vmatprep.subr.mxu0 0.0
    %1424 = vmatpush2.msra.mxu0 0.0
    %1425 = vmatprep.subr.mxu0 0.0
    %1426 = vmatpush2.msra.mxu0 0.0
    %1427 = vmatprep.subr.mxu0 0.0
    %1428 = vmatpush2.msra.mxu0 0.0
    %1429 = vmatprep.subr.mxu0 0.0
    %1430 = vmatpush2.msra.mxu0 0.0
    %1431 = vmatprep.subr.mxu0 0.0
    %1432 = vmatpush2.msra.mxu0 0.0
    %1433 = vmatprep.subr.mxu0 0.0
    %1434 = vmatpush2.msra.mxu0 0.0
    %1435 = vmatprep.subr.mxu0 0.0
    %1436 = vmatpush2.msra.mxu0 0.0
    %1437 = vmatprep.subr.mxu0 0.0
    %1438 = vmatpush2.msra.mxu0 0.0
    %1439 = vmatprep.subr.mxu0 0.0
    %1440 = vmatpush2.msra.mxu0 0.0
    %1441 = vmatprep.subr.mxu0 0.0
    %1442 = vmatpush2.msra.mxu0 0.0
    %1443 = vmatprep.subr.mxu0 0.0
    %1444 = vmatpush2.msra.mxu0 0.0
    %1445 = vmatprep.subr.mxu0 0.0
    %1446 = vmatpush2.msra.mxu0 0.0
    %1447 = vmatprep.subr.mxu0 0.0
    %1448 = vmatpush2.msra.mxu0 0.0
    %1449 = vmatprep.mubr.f32.mxu0 0.0
    %v1450 = vand.u32 %v60, 4294901760
    %v1451 = vsub.f32 %v60, %v1450
    %1452 = vmatmul.mubr.f32.gmra.mxu0 %v1451
    %v1453 = vpop.f32.mrf.mxu0
    %v1454 = vadd.f32 %v1317, %v1453
    %v1455 = vpop.f32.mrf.mxu0
    %v1456 = vadd.f32 %v1319, %v1455
    %1457 = vdwg.mxu0
    %v1458 = vand.u32 %v92, 4294901760
    %1459 = vmatprep.subr.mxu0 %v1458
    %v1460 = vand.u32 %v91, 4294901760
    %1461 = vmatpush1.msra.mxu0 %v1460
    %v1462 = vand.u32 %v90, 4294901760
    %1463 = vmatprep.subr.mxu0 %v1462
    %v1464 = vand.u32 %v89, 4294901760
    %1465 = vmatpush1.msra.mxu0 %v1464
    %v1466 = vand.u32 %v88, 4294901760
    %1467 = vmatprep.subr.mxu0 %v1466
    %v1468 = vand.u32 %v87, 4294901760
    %1469 = vmatpush1.msra.mxu0 %v1468
    %v1470 = vand.u32 %v86, 4294901760
    %1471 = vmatprep.subr.mxu0 %v1470
    %v1472 = vand.u32 %v85, 4294901760
    %1473 = vmatpush1.msra.mxu0 %v1472
    %v1474 = vand.u32 %v84, 4294901760
    %1475 = vmatprep.subr.mxu0 %v1474
    %v1476 = vand.u32 %v83, 4294901760
    %1477 = vmatpush1.msra.mxu0 %v1476
    %v1478 = vand.u32 %v82, 4294901760
    %1479 = vmatprep.subr.mxu0 %v1478
    %v1480 = vand.u32 %v81, 4294901760
    %1481 = vmatpush1.msra.mxu0 %v1480
    %v1482 = vand.u32 %v80, 4294901760
    %1483 = vmatprep.subr.mxu0 %v1482
    %v1484 = vand.u32 %v79, 4294901760
    %1485 = vmatpush1.msra.mxu0 %v1484
    %v1486 = vand.u32 %v78, 4294901760
    %1487 = vmatprep.subr.mxu0 %v1486
    %v1488 = vand.u32 %v77, 4294901760
    %1489 = vmatpush1.msra.mxu0 %v1488
    %v1490 = vand.u32 %v76, 4294901760
    %1491 = vmatprep.subr.mxu0 %v1490
    %v1492 = vand.u32 %v75, 4294901760
    %1493 = vmatpush1.msra.mxu0 %v1492
    %v1494 = vand.u32 %v74, 4294901760
    %1495 = vmatprep.subr.mxu0 %v1494
    %v1496 = vand.u32 %v73, 4294901760
    %1497 = vmatpush1.msra.mxu0 %v1496
    %v1498 = vand.u32 %v72, 4294901760
    %1499 = vmatprep.subr.mxu0 %v1498
    %v1500 = vand.u32 %v71, 4294901760
    %1501 = vmatpush1.msra.mxu0 %v1500
    %v1502 = vand.u32 %v70, 4294901760
    %1503 = vmatprep.subr.mxu0 %v1502
    %v1504 = vand.u32 %v69, 4294901760
    %1505 = vmatpush1.msra.mxu0 %v1504
    %v1506 = vand.u32 %v68, 4294901760
    %1507 = vmatprep.subr.mxu0 %v1506
    %v1508 = vand.u32 %v67, 4294901760
    %1509 = vmatpush1.msra.mxu0 %v1508
    %v1510 = vand.u32 %v66, 4294901760
    %1511 = vmatprep.subr.mxu0 %v1510
    %v1512 = vand.u32 %v65, 4294901760
    %1513 = vmatpush1.msra.mxu0 %v1512
    %v1514 = vand.u32 %v64, 4294901760
    %1515 = vmatprep.subr.mxu0 %v1514
    %v1516 = vand.u32 %v63, 4294901760
    %1517 = vmatpush1.msra.mxu0 %v1516
    %v1518 = vand.u32 %v62, 4294901760
    %1519 = vmatprep.subr.mxu0 %v1518
    %v1520 = vand.u32 %v61, 4294901760
    %1521 = vmatpush1.msra.mxu0 %v1520
    %1522 = vmatprep.subr.mxu0 0.0
    %1523 = vmatpush2.msra.mxu0 0.0
    %1524 = vmatprep.subr.mxu0 0.0
    %1525 = vmatpush2.msra.mxu0 0.0
    %1526 = vmatprep.subr.mxu0 0.0
    %1527 = vmatpush2.msra.mxu0 0.0
    %1528 = vmatprep.subr.mxu0 0.0
    %1529 = vmatpush2.msra.mxu0 0.0
    %1530 = vmatprep.subr.mxu0 0.0
    %1531 = vmatpush2.msra.mxu0 0.0
    %1532 = vmatprep.subr.mxu0 0.0
    %1533 = vmatpush2.msra.mxu0 0.0
    %1534 = vmatprep.subr.mxu0 0.0
    %1535 = vmatpush2.msra.mxu0 0.0
    %1536 = vmatprep.subr.mxu0 0.0
    %1537 = vmatpush2.msra.mxu0 0.0
    %1538 = vmatprep.subr.mxu0 0.0
    %1539 = vmatpush2.msra.mxu0 0.0
    %1540 = vmatprep.subr.mxu0 0.0
    %1541 = vmatpush2.msra.mxu0 0.0
    %1542 = vmatprep.subr.mxu0 0.0
    %1543 = vmatpush2.msra.mxu0 0.0
    %1544 = vmatprep.subr.mxu0 0.0
    %1545 = vmatpush2.msra.mxu0 0.0
    %1546 = vmatprep.subr.mxu0 0.0
    %1547 = vmatpush2.msra.mxu0 0.0
    %1548 = vmatprep.subr.mxu0 0.0
    %1549 = vmatpush2.msra.mxu0 0.0
    %1550 = vmatprep.subr.mxu0 0.0
    %1551 = vmatpush2.msra.mxu0 0.0
    %1552 = vmatprep.subr.mxu0 0.0
    %1553 = vmatpush2.msra.mxu0 0.0
    %1554 = vmatprep.mubr.f32.mxu0 0.0
    %v1555 = vand.u32 %v60, 4294901760
    %v1556 = vsub.f32 %v60, %v1555
    %v1557 = vand.u32 %v1556, 4294901760
    %1558 = vmatmul.mubr.f32.gmra.mxu0 %v1557
    %v1559 = vpop.f32.mrf.mxu0
    %v1560 = vadd.f32 %v1454, %v1559
    %v1561 = vpop.f32.mrf.mxu0
    %v1562 = vadd.f32 %v1456, %v1561
    %1563 = vdwg.mxu0
    %v1564 = vand.u32 %v92, 4294901760
    %v1565 = vsub.f32 %v92, %v1564
    %v1566 = vand.u32 %v1565, 4294901760
    %1567 = vmatprep.subr.mxu0 %v1566
    %v1568 = vand.u32 %v91, 4294901760
    %v1569 = vsub.f32 %v91, %v1568
    %v1570 = vand.u32 %v1569, 4294901760
    %1571 = vmatpush1.msra.mxu0 %v1570
    %v1572 = vand.u32 %v90, 4294901760
    %v1573 = vsub.f32 %v90, %v1572
    %v1574 = vand.u32 %v1573, 4294901760
    %1575 = vmatprep.subr.mxu0 %v1574
    %v1576 = vand.u32 %v89, 4294901760
    %v1577 = vsub.f32 %v89, %v1576
    %v1578 = vand.u32 %v1577, 4294901760
    %1579 = vmatpush1.msra.mxu0 %v1578
    %v1580 = vand.u32 %v88, 4294901760
    %v1581 = vsub.f32 %v88, %v1580
    %v1582 = vand.u32 %v1581, 4294901760
    %1583 = vmatprep.subr.mxu0 %v1582
    %v1584 = vand.u32 %v87, 4294901760
    %v1585 = vsub.f32 %v87, %v1584
    %v1586 = vand.u32 %v1585, 4294901760
    %1587 = vmatpush1.msra.mxu0 %v1586
    %v1588 = vand.u32 %v86, 4294901760
    %v1589 = vsub.f32 %v86, %v1588
    %v1590 = vand.u32 %v1589, 4294901760
    %1591 = vmatprep.subr.mxu0 %v1590
    %v1592 = vand.u32 %v85, 4294901760
    %v1593 = vsub.f32 %v85, %v1592
    %v1594 = vand.u32 %v1593, 4294901760
    %1595 = vmatpush1.msra.mxu0 %v1594
    %v1596 = vand.u32 %v84, 4294901760
    %v1597 = vsub.f32 %v84, %v1596
    %v1598 = vand.u32 %v1597, 4294901760
    %1599 = vmatprep.subr.mxu0 %v1598
    %v1600 = vand.u32 %v83, 4294901760
    %v1601 = vsub.f32 %v83, %v1600
    %v1602 = vand.u32 %v1601, 4294901760
    %1603 = vmatpush1.msra.mxu0 %v1602
    %v1604 = vand.u32 %v82, 4294901760
    %v1605 = vsub.f32 %v82, %v1604
    %v1606 = vand.u32 %v1605, 4294901760
    %1607 = vmatprep.subr.mxu0 %v1606
    %v1608 = vand.u32 %v81, 4294901760
    %v1609 = vsub.f32 %v81, %v1608
    %v1610 = vand.u32 %v1609, 4294901760
    %1611 = vmatpush1.msra.mxu0 %v1610
    %v1612 = vand.u32 %v80, 4294901760
    %v1613 = vsub.f32 %v80, %v1612
    %v1614 = vand.u32 %v1613, 4294901760
    %1615 = vmatprep.subr.mxu0 %v1614
    %v1616 = vand.u32 %v79, 4294901760
    %v1617 = vsub.f32 %v79, %v1616
    %v1618 = vand.u32 %v1617, 4294901760
    %1619 = vmatpush1.msra.mxu0 %v1618
    %v1620 = vand.u32 %v78, 4294901760
    %v1621 = vsub.f32 %v78, %v1620
    %v1622 = vand.u32 %v1621, 4294901760
    %1623 = vmatprep.subr.mxu0 %v1622
    %v1624 = vand.u32 %v77, 4294901760
    %v1625 = vsub.f32 %v77, %v1624
    %v1626 = vand.u32 %v1625, 4294901760
    %1627 = vmatpush1.msra.mxu0 %v1626
    %v1628 = vand.u32 %v76, 4294901760
    %v1629 = vsub.f32 %v76, %v1628
    %v1630 = vand.u32 %v1629, 4294901760
    %1631 = vmatprep.subr.mxu0 %v1630
    %v1632 = vand.u32 %v75, 4294901760
    %v1633 = vsub.f32 %v75, %v1632
    %v1634 = vand.u32 %v1633, 4294901760
    %1635 = vmatpush1.msra.mxu0 %v1634
    %v1636 = vand.u32 %v74, 4294901760
    %v1637 = vsub.f32 %v74, %v1636
    %v1638 = vand.u32 %v1637, 4294901760
    %1639 = vmatprep.subr.mxu0 %v1638
    %v1640 = vand.u32 %v73, 4294901760
    %v1641 = vsub.f32 %v73, %v1640
    %v1642 = vand.u32 %v1641, 4294901760
    %1643 = vmatpush1.msra.mxu0 %v1642
    %v1644 = vand.u32 %v72, 4294901760
    %v1645 = vsub.f32 %v72, %v1644
    %v1646 = vand.u32 %v1645, 4294901760
    %1647 = vmatprep.subr.mxu0 %v1646
    %v1648 = vand.u32 %v71, 4294901760
    %v1649 = vsub.f32 %v71, %v1648
    %v1650 = vand.u32 %v1649, 4294901760
    %1651 = vmatpush1.msra.mxu0 %v1650
    %v1652 = vand.u32 %v70, 4294901760
    %v1653 = vsub.f32 %v70, %v1652
    %v1654 = vand.u32 %v1653, 4294901760
    %1655 = vmatprep.subr.mxu0 %v1654
    %v1656 = vand.u32 %v69, 4294901760
    %v1657 = vsub.f32 %v69, %v1656
    %v1658 = vand.u32 %v1657, 4294901760
    %1659 = vmatpush1.msra.mxu0 %v1658
    %v1660 = vand.u32 %v68, 4294901760
    %v1661 = vsub.f32 %v68, %v1660
    %v1662 = vand.u32 %v1661, 4294901760
    %1663 = vmatprep.subr.mxu0 %v1662
    %v1664 = vand.u32 %v67, 4294901760
    %v1665 = vsub.f32 %v67, %v1664
    %v1666 = vand.u32 %v1665, 4294901760
    %1667 = vmatpush1.msra.mxu0 %v1666
    %v1668 = vand.u32 %v66, 4294901760
    %v1669 = vsub.f32 %v66, %v1668
    %v1670 = vand.u32 %v1669, 4294901760
    %1671 = vmatprep.subr.mxu0 %v1670
    %v1672 = vand.u32 %v65, 4294901760
    %v1673 = vsub.f32 %v65, %v1672
    %v1674 = vand.u32 %v1673, 4294901760
    %1675 = vmatpush1.msra.mxu0 %v1674
    %v1676 = vand.u32 %v64, 4294901760
    %v1677 = vsub.f32 %v64, %v1676
    %v1678 = vand.u32 %v1677, 4294901760
    %1679 = vmatprep.subr.mxu0 %v1678
    %v1680 = vand.u32 %v63, 4294901760
    %v1681 = vsub.f32 %v63, %v1680
    %v1682 = vand.u32 %v1681, 4294901760
    %1683 = vmatpush1.msra.mxu0 %v1682
    %v1684 = vand.u32 %v62, 4294901760
    %v1685 = vsub.f32 %v62, %v1684
    %v1686 = vand.u32 %v1685, 4294901760
    %1687 = vmatprep.subr.mxu0 %v1686
    %v1688 = vand.u32 %v61, 4294901760
    %v1689 = vsub.f32 %v61, %v1688
    %v1690 = vand.u32 %v1689, 4294901760
    %1691 = vmatpush1.msra.mxu0 %v1690
    %1692 = vmatprep.subr.mxu0 0.0
    %1693 = vmatpush2.msra.mxu0 0.0
    %1694 = vmatprep.subr.mxu0 0.0
    %1695 = vmatpush2.msra.mxu0 0.0
    %1696 = vmatprep.subr.mxu0 0.0
    %1697 = vmatpush2.msra.mxu0 0.0
    %1698 = vmatprep.subr.mxu0 0.0
    %1699 = vmatpush2.msra.mxu0 0.0
    %1700 = vmatprep.subr.mxu0 0.0
    %1701 = vmatpush2.msra.mxu0 0.0
    %1702 = vmatprep.subr.mxu0 0.0
    %1703 = vmatpush2.msra.mxu0 0.0
    %1704 = vmatprep.subr.mxu0 0.0
    %1705 = vmatpush2.msra.mxu0 0.0
    %1706 = vmatprep.subr.mxu0 0.0
    %1707 = vmatpush2.msra.mxu0 0.0
    %1708 = vmatprep.subr.mxu0 0.0
    %1709 = vmatpush2.msra.mxu0 0.0
    %1710 = vmatprep.subr.mxu0 0.0
    %1711 = vmatpush2.msra.mxu0 0.0
    %1712 = vmatprep.subr.mxu0 0.0
    %1713 = vmatpush2.msra.mxu0 0.0
    %1714 = vmatprep.subr.mxu0 0.0
    %1715 = vmatpush2.msra.mxu0 0.0
    %1716 = vmatprep.subr.mxu0 0.0
    %1717 = vmatpush2.msra.mxu0 0.0
    %1718 = vmatprep.subr.mxu0 0.0
    %1719 = vmatpush2.msra.mxu0 0.0
    %1720 = vmatprep.subr.mxu0 0.0
    %1721 = vmatpush2.msra.mxu0 0.0
    %1722 = vmatprep.subr.mxu0 0.0
    %1723 = vmatpush2.msra.mxu0 0.0
    %1724 = vmatprep.mubr.f32.mxu0 0.0
    %v1725 = vand.u32 %v60, 4294901760
    %1726 = vmatmul.mubr.f32.gmra.mxu0 %v1725
    %v1727 = vpop.f32.mrf.mxu0
    %v1728 = vadd.f32 %v1560, %v1727
    %v1729 = vpop.f32.mrf.mxu0
    %v1730 = vadd.f32 %v1562, %v1729
    %1731 = vdwg.mxu0
    %v1732 = vand.u32 %v92, 4294901760
    %1733 = vmatprep.subr.mxu0 %v1732
    %v1734 = vand.u32 %v91, 4294901760
    %1735 = vmatpush1.msra.mxu0 %v1734
    %v1736 = vand.u32 %v90, 4294901760
    %1737 = vmatprep.subr.mxu0 %v1736
    %v1738 = vand.u32 %v89, 4294901760
    %1739 = vmatpush1.msra.mxu0 %v1738
    %v1740 = vand.u32 %v88, 4294901760
    %1741 = vmatprep.subr.mxu0 %v1740
    %v1742 = vand.u32 %v87, 4294901760
    %1743 = vmatpush1.msra.mxu0 %v1742
    %v1744 = vand.u32 %v86, 4294901760
    %1745 = vmatprep.subr.mxu0 %v1744
    %v1746 = vand.u32 %v85, 4294901760
    %1747 = vmatpush1.msra.mxu0 %v1746
    %v1748 = vand.u32 %v84, 4294901760
    %1749 = vmatprep.subr.mxu0 %v1748
    %v1750 = vand.u32 %v83, 4294901760
    %1751 = vmatpush1.msra.mxu0 %v1750
    %v1752 = vand.u32 %v82, 4294901760
    %1753 = vmatprep.subr.mxu0 %v1752
    %v1754 = vand.u32 %v81, 4294901760
    %1755 = vmatpush1.msra.mxu0 %v1754
    %v1756 = vand.u32 %v80, 4294901760
    %1757 = vmatprep.subr.mxu0 %v1756
    %v1758 = vand.u32 %v79, 4294901760
    %1759 = vmatpush1.msra.mxu0 %v1758
    %v1760 = vand.u32 %v78, 4294901760
    %1761 = vmatprep.subr.mxu0 %v1760
    %v1762 = vand.u32 %v77, 4294901760
    %1763 = vmatpush1.msra.mxu0 %v1762
    %v1764 = vand.u32 %v76, 4294901760
    %1765 = vmatprep.subr.mxu0 %v1764
    %v1766 = vand.u32 %v75, 4294901760
    %1767 = vmatpush1.msra.mxu0 %v1766
    %v1768 = vand.u32 %v74, 4294901760
    %1769 = vmatprep.subr.mxu0 %v1768
    %v1770 = vand.u32 %v73, 4294901760
    %1771 = vmatpush1.msra.mxu0 %v1770
    %v1772 = vand.u32 %v72, 4294901760
    %1773 = vmatprep.subr.mxu0 %v1772
    %v1774 = vand.u32 %v71, 4294901760
    %1775 = vmatpush1.msra.mxu0 %v1774
    %v1776 = vand.u32 %v70, 4294901760
    %1777 = vmatprep.subr.mxu0 %v1776
    %v1778 = vand.u32 %v69, 4294901760
    %1779 = vmatpush1.msra.mxu0 %v1778
    %v1780 = vand.u32 %v68, 4294901760
    %1781 = vmatprep.subr.mxu0 %v1780
    %v1782 = vand.u32 %v67, 4294901760
    %1783 = vmatpush1.msra.mxu0 %v1782
    %v1784 = vand.u32 %v66, 4294901760
    %1785 = vmatprep.subr.mxu0 %v1784
    %v1786 = vand.u32 %v65, 4294901760
    %1787 = vmatpush1.msra.mxu0 %v1786
    %v1788 = vand.u32 %v64, 4294901760
    %1789 = vmatprep.subr.mxu0 %v1788
    %v1790 = vand.u32 %v63, 4294901760
    %1791 = vmatpush1.msra.mxu0 %v1790
    %v1792 = vand.u32 %v62, 4294901760
    %1793 = vmatprep.subr.mxu0 %v1792
    %v1794 = vand.u32 %v61, 4294901760
    %1795 = vmatpush1.msra.mxu0 %v1794
    %1796 = vmatprep.subr.mxu0 0.0
    %1797 = vmatpush2.msra.mxu0 0.0
    %1798 = vmatprep.subr.mxu0 0.0
    %1799 = vmatpush2.msra.mxu0 0.0
    %1800 = vmatprep.subr.mxu0 0.0
    %1801 = vmatpush2.msra.mxu0 0.0
    %1802 = vmatprep.subr.mxu0 0.0
    %1803 = vmatpush2.msra.mxu0 0.0
    %1804 = vmatprep.subr.mxu0 0.0
    %1805 = vmatpush2.msra.mxu0 0.0
    %1806 = vmatprep.subr.mxu0 0.0
    %1807 = vmatpush2.msra.mxu0 0.0
    %1808 = vmatprep.subr.mxu0 0.0
    %1809 = vmatpush2.msra.mxu0 0.0
    %1810 = vmatprep.subr.mxu0 0.0
    %1811 = vmatpush2.msra.mxu0 0.0
    %1812 = vmatprep.subr.mxu0 0.0
    %1813 = vmatpush2.msra.mxu0 0.0
    %1814 = vmatprep.subr.mxu0 0.0
    %1815 = vmatpush2.msra.mxu0 0.0
    %1816 = vmatprep.subr.mxu0 0.0
    %1817 = vmatpush2.msra.mxu0 0.0
    %1818 = vmatprep.subr.mxu0 0.0
    %1819 = vmatpush2.msra.mxu0 0.0
    %1820 = vmatprep.subr.mxu0 0.0
    %1821 = vmatpush2.msra.mxu0 0.0
    %1822 = vmatprep.subr.mxu0 0.0
    %1823 = vmatpush2.msra.mxu0 0.0
    %1824 = vmatprep.subr.mxu0 0.0
    %1825 = vmatpush2.msra.mxu0 0.0
    %1826 = vmatprep.subr.mxu0 0.0
    %1827 = vmatpush2.msra.mxu0 0.0
    %1828 = vmatprep.mubr.f32.mxu0 0.0
    %v1829 = vand.u32 %v60, 4294901760
    %1830 = vmatmul.mubr.f32.gmra.mxu0 %v1829
    %v1831 = vpop.f32.mrf.mxu0
    %v1832 = vadd.f32 %v1728, %v1831
    %v1833 = vpop.f32.mrf.mxu0
    %v1834 = vadd.f32 %v1730, %v1833
    %1835 = vdwg.mxu0
    %1836 = vst [vmem:[#allocation8] sm:$0x1] %v1832
    %1837 = vst [vmem:[#allocation9] sm:$0x1] %v1834
    // Predicated region
    $region30: #{tpu_custom_call.1} parent=1 // pred_check
      _
    $region31: #{tpu_custom_call.1} parent=1 // pred_check_branch
      %1839 = sbr.rel (0) target = $region33
    $region32: #{tpu_custom_call.1} parent=1 // pred_region
      %s1841 = ssub.s32 16, 16
      %1842 = vsyncadd [#allocation4], %s1841
      %s1844 = sshll.u32 [#allocation8], 4
      %s1845 = int_to_ptr.vmem [resolvable:$true] %s1844
      %1847 = dma.vmem_to_hbm [thread:$0]  %s1845, 16, %s4, [#allocation4]
    $region33: #{tpu_custom_call.1} parent=1 // pred_fallthru
      _
    // Predicated region
    $region34: #{tpu_custom_call.1} parent=1 // pred_check
      _
    $region35: #{tpu_custom_call.1} parent=1 // pred_check_branch
      %1849 = sbr.rel (0) target = $region37
    $region36: #{tpu_custom_call.1} parent=1 // pred_region
      %s1851 = ssub.s32 16, 16
      %1852 = vsyncadd [#allocation10], %s1851
      %s1854 = sshll.u32 [#allocation9], 4
      %s1855 = int_to_ptr.vmem [resolvable:$true] %s1854
      %1857 = dma.vmem_to_hbm [thread:$0]  %s1855, 16, %s5, [#allocation10]
    $region37: #{tpu_custom_call.1} parent=1 // pred_fallthru
      _
    // Predicated region
    $region38: #{tpu_custom_call.1} parent=1 // pred_check
      _
    $region39: #{tpu_custom_call.1} parent=1 // pred_check_branch
      %1859 = sbr.rel (0) target = $region41
    $region40: #{tpu_custom_call.1} parent=1 // pred_region
      %1860 = dma.done [#allocation4], 16
    $region41: #{tpu_custom_call.1} parent=1 // pred_fallthru
      _
    // Predicated region
    $region42: #{tpu_custom_call.1} parent=1 // pred_check
      _
    $region43: #{tpu_custom_call.1} parent=1 // pred_check_branch
      %1862 = sbr.rel (0) target = $region45
    $region44: #{tpu_custom_call.1} parent=1 // pred_region
      %1863 = dma.done [#allocation10], 16
    $region45: #{tpu_custom_call.1} parent=1 // pred_fallthru
      _
    %1864 = vsyncpa [#allocation3], 1
    %1865 = vsyncpa [#allocation6], 1
    %1866 = vsyncpa [#allocation4], 1
    %1867 = vsyncpa [#allocation10], 1

</llo_original>
